<compile_context>
chip_gen: v7x
topology: tpu7x:2x2x1
jax: 0.10.0
libtpu: 0.0.40
codegen_flags: <defaults>
</compile_context>

<pallas_src>
import jax
import jax.numpy as jnp
from jax.experimental import pallas as pl
from jax.experimental.pallas import tpu as pltpu


# ---------------------------------------------------------------------------
# Kernel: one grid step == one decode step. Weights resident, hidden carried in VMEM scratch.
# ---------------------------------------------------------------------------
def decode_kernel(tok_ref,                      # SMEM (T, B) int32   (scalar prefetch)
                  h0_ref, enc_ref, emb_ref,     # VMEM: (B,H2) f32, (B,S,H2) f32, (V,H) f32
                  wg_ref, bg_ref,               # VMEM: (2H+H2+H, 4H2) bf16, (1, 4H2) f32
                  wo_ref, bo_ref,               # VMEM: (H2, V) bf16, (1, V) f32
                  out_ref, hid_ref, attn_ref,   # VMEM out: (1,B,V), (B,H2), (1,B,S)
                  h_carry, emb_scratch):        # VMEM scratch: (B,H2) f32, (B,H) f32
    t = pl.program_id(0)

    # --- init hidden carry from the provided last_hidden on the first step ---
    @pl.when(t == 0)
    def _():
        h_carry[...] = h0_ref[...]

    h_prev = h_carry[...]                                   # (B, H2) f32
    enc = enc_ref[...]                                      # (B, S, H2) f32
    B = h_prev.shape[0]
    H2 = h_prev.shape[-1]

    # --- embedding gather for this step's tokens (dropout = identity, eval mode) ---
    # TODO(synk): for realistic vocab sizes, DMA-gather rows from an HBM-resident table instead
    # of keeping the whole embedding in VMEM.
    for b in range(B):                                      # B is small & static
        tok = tok_ref[t, b]
        emb_scratch[pl.ds(b, 1), :] = emb_ref[pl.ds(tok, 1), :]
    emb = emb_scratch[...]                                  # (B, H) f32

    # --- dot attention: scores[b,s] = <h_prev[b], enc[b,s]>, softmax over s ---
    scores = jnp.sum(enc * h_prev[:, None, :], axis=-1)     # (B, S) f32
    m = jnp.max(scores, axis=-1, keepdims=True)
    e = jnp.exp(scores - m)
    attn = e * pl.reciprocal(jnp.sum(e, axis=-1, keepdims=True), approx=False)
    attn_ref[0] = attn                                      # (B, S)

    # --- context = attn @ encoder_outputs ---
    context = jnp.sum(attn[:, :, None] * enc, axis=1)       # (B, H2) f32

    # --- fused GRU cell: single stacked MXU matmul (PyTorch gate order r, z, n) ---
    # columns of g: [ (gi+gh) for r,z | gi_n | gh_n ]
    x_all = jnp.concatenate([context, h_prev, emb], axis=-1).astype(wg_ref.dtype)
    g = jnp.dot(x_all, wg_ref[...], preferred_element_type=jnp.float32) + bg_ref[...]  # (B, 4H2)
    r = jax.nn.sigmoid(g[:, 0 * H2:1 * H2])
    z = jax.nn.sigmoid(g[:, 1 * H2:2 * H2])
    n = jnp.tanh(g[:, 2 * H2:3 * H2] + r * g[:, 3 * H2:4 * H2])
    h_new = (1.0 - z) * n + z * h_prev                      # (B, H2) f32
    h_carry[...] = h_new
    hid_ref[...] = h_new                                    # resident; written back at grid end

    # --- output projection + log-softmax ---
    # TODO(synk): for realistic vocab sizes, tile w_out over V (extra "parallel" grid axis for
    # v7x's two TensorCores) with an online log-softmax; unnecessary at V=128.
    logits = jnp.dot(h_new.astype(wo_ref.dtype), wo_ref[...],
                     preferred_element_type=jnp.float32) + bo_ref[...]                 # (B, V)
    lm = jnp.max(logits, axis=-1, keepdims=True)
    lse = jnp.log(jnp.sum(jnp.exp(logits - lm), axis=-1, keepdims=True))
    out_ref[0] = logits - lm - lse


# ---------------------------------------------------------------------------
# Wrappers
# ---------------------------------------------------------------------------
def attn_decoder_decode(tokens, last_hidden, encoder_outputs, kp):
    """Fused multi-step greedy-teacher decode: tokens (T,B) int32 -> per-step outputs."""
    T, B = tokens.shape
    S = encoder_outputs.shape[1]
    H2 = last_hidden.shape[2]
    V, H = kp["embedding"].shape
    h0 = last_hidden[0]

    grid_spec = pltpu.PrefetchScalarGridSpec(
        num_scalar_prefetch=1,
        grid=(T,),
        in_specs=[
            pl.BlockSpec((B, H2), lambda t, tok: (0, 0)),            # h0 (resident)
            pl.BlockSpec((B, S, H2), lambda t, tok: (0, 0, 0)),      # encoder_outputs (resident)
            pl.BlockSpec((V, H), lambda t, tok: (0, 0)),             # embedding table (resident)
            pl.BlockSpec(kp["w_gru"].shape, lambda t, tok: (0, 0)),  # stacked GRU weight (resident)
            pl.BlockSpec(kp["b_gru"].shape, lambda t, tok: (0, 0)),
            pl.BlockSpec(kp["w_out"].shape, lambda t, tok: (0, 0)),  # output projection (resident)
            pl.BlockSpec(kp["b_out"].shape, lambda t, tok: (0, 0)),
        ],
        out_specs=(
            pl.BlockSpec((1, B, V), lambda t, tok: (t, 0, 0)),       # per-step log-probs
            pl.BlockSpec((B, H2), lambda t, tok: (0, 0)),            # final hidden (resident)
            pl.BlockSpec((1, B, S), lambda t, tok: (t, 0, 0)),       # per-step attention
        ),
        scratch_shapes=[
            pltpu.VMEM((B, H2), jnp.float32),                        # hidden carry across steps
            pltpu.VMEM((B, H), jnp.float32),                         # gathered embedding rows
        ],
    )

    out, h_final, attn = pl.pallas_call(
        decode_kernel,
        grid_spec=grid_spec,
        out_shape=(
            jax.ShapeDtypeStruct((T, B, V), jnp.float32),
            jax.ShapeDtypeStruct((B, H2), jnp.float32),
            jax.ShapeDtypeStruct((T, B, S), jnp.float32),
        ),
        compiler_params=pltpu.CompilerParams(dimension_semantics=("arbitrary",)),
    )(tokens, h0, encoder_outputs, kp["embedding"],
      kp["w_gru"], kp["b_gru"], kp["w_out"], kp["b_out"])

    return out, h_final.reshape(1, B, H2), attn


def attn_decoder_forward(word_input, last_hidden, encoder_outputs, kp):
    """Matches AttnDecoderRNN.forward (attention='dot', rnn='gru', n_layers=1, eval mode)."""
    out, hidden, attn = attn_decoder_decode(word_input[None, :], last_hidden, encoder_outputs, kp)
    output = jnp.transpose(out, (1, 0, 2))        # (B, 1, V)  log-softmax over dim=2
    attn_weights = jnp.transpose(attn, (1, 0, 2)) # (B, 1, S)
    return output, hidden, attn_weights           # hidden: (1, B, 2*hidden)


# ---------------------------------------------------------------------------
# Parameter prep (stacked GRU weight, bf16 storage for the big matrices)
# ---------------------------------------------------------------------------
def make_params(key, hidden_size, output_size):
    """PyTorch-equivalent f32 parameters (GRU weights pre-transposed, gate order [r,z,n])."""
    H, H2, H3, V = hidden_size, 2 * hidden_size, 3 * hidden_size, output_size
    ks = jax.random.split(key, 7)
    scale = 0.1
    return {
        "embedding": scale * jax.random.normal(ks[0], (V, H), jnp.float32),
        "w_ih_t": scale * jax.random.normal(ks[1], (H3, 3 * H2), jnp.float32),
        "w_hh_t": scale * jax.random.normal(ks[2], (H2, 3 * H2), jnp.float32),
        "b_ih": scale * jax.random.normal(ks[3], (1, 3 * H2), jnp.float32),
        "b_hh": scale * jax.random.normal(ks[4], (1, 3 * H2), jnp.float32),
        "w_out_t": scale * jax.random.normal(ks[5], (H2, V), jnp.float32),
        "b_out": scale * jax.random.normal(ks[6], (1, V), jnp.float32),
    }


def prepare_kernel_params(p, weights_dtype=jnp.bfloat16):
    """Build the fused/stacked kernel weights. Rows: [context(2H) | h_prev(H2) | emb(H)],
    columns: [ rz fused (2H2) | gi_n (H2) | gh_n (H2) ]."""
    w_ih, w_hh = p["w_ih_t"], p["w_hh_t"]
    H3 = w_ih.shape[0]
    H = H3 // 3
    H2 = w_hh.shape[0]
    f32 = jnp.float32

    ih_ctx, ih_emb = w_ih[:2 * H], w_ih[2 * H:]
    row_ctx = jnp.concatenate([ih_ctx[:, :2 * H2], ih_ctx[:, 2 * H2:], jnp.zeros((2 * H, H2), f32)], axis=1)
    row_h = jnp.concatenate([w_hh[:, :2 * H2], jnp.zeros((H2, H2), f32), w_hh[:, 2 * H2:]], axis=1)
    row_emb = jnp.concatenate([ih_emb[:, :2 * H2], ih_emb[:, 2 * H2:], jnp.zeros((H, H2), f32)], axis=1)
    w_gru = jnp.concatenate([row_ctx, row_h, row_emb], axis=0).astype(weights_dtype)   # (2H+H2+H, 4H2)

    b_gru = jnp.concatenate([p["b_ih"][:, :2 * H2] + p["b_hh"][:, :2 * H2],
                             p["b_ih"][:, 2 * H2:], p["b_hh"][:, 2 * H2:]], axis=1)    # (1, 4H2) f32

    return {
        "embedding": p["embedding"],                       # f32 (V, H)
        "w_gru": w_gru,                                    # bf16
        "b_gru": b_gru,                                    # f32
        "w_out": p["w_out_t"].astype(weights_dtype),       # bf16 (H2, V)
        "b_out": p["b_out"],                               # f32 (1, V)
    }


# ---------------------------------------------------------------------------
# Pure-JAX references (for verification)
# ---------------------------------------------------------------------------
def reference_step(token, h0, enc, params, weights_dtype=None):
    cast = (lambda x: x.astype(weights_dtype)) if weights_dtype is not None else (lambda x: x)
    emb = jnp.take(params["embedding"], token, axis=0)
    scores = jnp.einsum("bk,bsk->bs", h0, enc)
    attn = jax.nn.softmax(scores, axis=-1)
    context = jnp.einsum("bs,bsk->bk", attn, enc)
    x = jnp.concatenate([context, emb], axis=-1)
    gi = jnp.dot(cast(x), cast(params["w_ih_t"]), preferred_element_type=jnp.float32) + params["b_ih"]
    gh = jnp.dot(cast(h0), cast(params["w_hh_t"]), preferred_element_type=jnp.float32) + params["b_hh"]
    H2 = h0.shape[-1]
    r = jax.nn.sigmoid(gi[:, :H2] + gh[:, :H2])
    z = jax.nn.sigmoid(gi[:, H2:2 * H2] + gh[:, H2:2 * H2])
    n = jnp.tanh(gi[:, 2 * H2:] + r * gh[:, 2 * H2:])
    h_new = (1.0 - z) * n + z * h0
    logits = jnp.dot(cast(h_new), cast(params["w_out_t"]), preferred_element_type=jnp.float32) + params["b_out"]
    return jax.nn.log_softmax(logits, axis=-1), h_new, attn


def reference_decode(tokens, last_hidden, enc, params, weights_dtype=None):
    h = last_hidden[0]
    outs, attns = [], []
    for t in range(tokens.shape[0]):
        o, h, a = reference_step(tokens[t], h, enc, params, weights_dtype)
        outs.append(o)
        attns.append(a)
    return jnp.stack(outs), h.reshape(1, *h.shape), jnp.stack(attns)


# ---------------------------------------------------------------------------
if __name__ == "__main__":
    # small shapes: batch=4, seq=8, hidden=64 (2*hidden=128 lane-aligned), vocab=128, 6 decode steps
    hidden_size, output_size = 64, 128
    B, S, T = 4, 8, 6
    H2 = 2 * hidden_size

    key = jax.random.PRNGKey(0)
    k_par, k_tok, k_hid, k_enc = jax.random.split(key, 4)

    params = make_params(k_par, hidden_size, output_size)
    kparams = prepare_kernel_params(params, weights_dtype=jnp.bfloat16)
    tokens = jax.random.randint(k_tok, (T, B), 0, output_size, dtype=jnp.int32)
    last_hidden = 0.1 * jax.random.normal(k_hid, (1, B, H2), jnp.float32)
    encoder_outputs = 0.1 * jax.random.normal(k_enc, (B, S, H2), jnp.float32)

    # --- fused multi-step decode (weights resident across steps) ---
    out, hidden, attn = attn_decoder_decode(tokens, last_hidden, encoder_outputs, kparams)
    jax.block_until_ready((out, hidden, attn))
    assert out.shape == (T, B, output_size) and hidden.shape == (1, B, H2) and attn.shape == (T, B, S)

    # tight check vs a reference using identical bf16 weight storage / bf16 MXU inputs
    out_m, hid_m, attn_m = reference_decode(tokens, last_hidden, encoder_outputs, params,
                                            weights_dtype=jnp.bfloat16)
    assert jnp.allclose(out, out_m, atol=1e-3, rtol=1e-3)
    assert jnp.allclose(hidden, hid_m, atol=1e-3, rtol=1e-3)
    assert jnp.allclose(attn, attn_m, atol=1e-3, rtol=1e-3)

    # semantic check vs the full-f32 PyTorch-equivalent reference (loose: bf16 weight storage)
    out_f, hid_f, attn_f = reference_decode(tokens, last_hidden, encoder_outputs, params)
    assert jnp.allclose(out, out_f, atol=5e-2, rtol=5e-2)
    assert jnp.allclose(hidden, hid_f, atol=5e-2, rtol=5e-2)
    assert jnp.allclose(attn, attn_f, atol=1e-2, rtol=1e-2)

    # --- single-step API parity with AttnDecoderRNN.forward ---
    out1, hid1, attn1 = attn_decoder_forward(tokens[0], last_hidden, encoder_outputs, kparams)
    jax.block_until_ready((out1, hid1, attn1))
    assert out1.shape == (B, 1, output_size) and hid1.shape == (1, B, H2) and attn1.shape == (B, 1, S)
    o_r, h_r, a_r = reference_step(tokens[0], last_hidden[0], encoder_outputs, params)
    assert jnp.allclose(out1[:, 0, :], o_r, atol=5e-2, rtol=5e-2)
    assert jnp.allclose(hid1[0], h_r, atol=5e-2, rtol=5e-2)
    assert jnp.allclose(attn1[:, 0, :], a_r, atol=1e-4)   # attention path is pure f32

    # TODO(synk): nn.Dropout(p=0.1) is treated as identity (eval mode); training-mode dropout would
    # need in-kernel pltpu.prng_seed/prng_random_bits.
    print("KERNEL_OK")
</pallas_src>

<mosaic_0001>
module attributes {stable_mosaic.version = 11 : i64} {
  func.func @decode_kernel(%arg0: i32, %arg1: memref<6x4xi32, #tpu.memory_space<smem>>, %arg2: memref<4x128xf32, #tpu.memory_space<vmem>>, %arg3: memref<4x8x128xf32, #tpu.memory_space<vmem>>, %arg4: memref<128x64xf32, #tpu.memory_space<vmem>>, %arg5: memref<320x512xbf16, #tpu.memory_space<vmem>>, %arg6: memref<1x512xf32, #tpu.memory_space<vmem>>, %arg7: memref<128x128xbf16, #tpu.memory_space<vmem>>, %arg8: memref<1x128xf32, #tpu.memory_space<vmem>>, %arg9: memref<1x4x128xf32, #tpu.memory_space<vmem>>, %arg10: memref<4x128xf32, #tpu.memory_space<vmem>>, %arg11: memref<1x4x8xf32, #tpu.memory_space<vmem>>, %arg12: memref<4x128xf32, #tpu.memory_space<vmem>>, %arg13: memref<4x64xf32, #tpu.memory_space<vmem>>) attributes {dimension_semantics = [#tpu.dimension_semantics<arbitrary>], iteration_bounds = array<i64: 6>, scalar_prefetch = 1 : i64, scratch_operands = 2 : i64, tpu.core_type = #tpu.core_type<tc>, window_params = [{pipeline_mode = #tpu.pipeline_mode<synchronous>, transform_indices = @transform_0, window_bounds = array<i64: 4, 128>}, {pipeline_mode = #tpu.pipeline_mode<synchronous>, transform_indices = @transform_1, window_bounds = array<i64: 4, 8, 128>}, {pipeline_mode = #tpu.pipeline_mode<synchronous>, transform_indices = @transform_2, window_bounds = array<i64: 128, 64>}, {pipeline_mode = #tpu.pipeline_mode<synchronous>, transform_indices = @transform_3, window_bounds = array<i64: 320, 512>}, {pipeline_mode = #tpu.pipeline_mode<synchronous>, transform_indices = @transform_4, window_bounds = array<i64: 1, 512>}, {pipeline_mode = #tpu.pipeline_mode<synchronous>, transform_indices = @transform_5, window_bounds = array<i64: 128, 128>}, {pipeline_mode = #tpu.pipeline_mode<synchronous>, transform_indices = @transform_6, window_bounds = array<i64: 1, 128>}, {transform_indices = @transform_7, window_bounds = array<i64: 1, 4, 128>}, {pipeline_mode = #tpu.pipeline_mode<synchronous>, transform_indices = @transform_8, window_bounds = array<i64: 4, 128>}, {transform_indices = @transform_9, window_bounds = array<i64: 1, 4, 8>}]} {
    %c0_i32 = arith.constant 0 : i32
    %0 = arith.cmpi eq, %arg0, %c0_i32 : i32
    %1 = arith.extui %0 : i1 to i32
    %c0_i32_0 = arith.constant 0 : i32
    %2 = arith.cmpi ne, %1, %c0_i32_0 : i32
    scf.if %2 {
      %c0_48 = arith.constant 0 : index
      %c0_49 = arith.constant 0 : index
      %99 = vector.load %arg2[%c0_48, %c0_49] : memref<4x128xf32, #tpu.memory_space<vmem>>, vector<4x128xf32>
      %c0_50 = arith.constant 0 : index
      %c0_51 = arith.constant 0 : index
      %100 = vector.load %arg12[%c0_50, %c0_51] : memref<4x128xf32, #tpu.memory_space<vmem>>, vector<4x128xf32>
      tpu.vector_store %arg12[%c0_50, %c0_51], %99 {strides = array<i32>} : memref<4x128xf32, #tpu.memory_space<vmem>>, vector<4x128xf32>,
    } else {
    }
    %c0 = arith.constant 0 : index
    %c0_1 = arith.constant 0 : index
    %3 = vector.load %arg12[%c0, %c0_1] : memref<4x128xf32, #tpu.memory_space<vmem>>, vector<4x128xf32>
    %c0_2 = arith.constant 0 : index
    %c0_3 = arith.constant 0 : index
    %c0_4 = arith.constant 0 : index
    %4 = vector.load %arg3[%c0_2, %c0_3, %c0_4] : memref<4x8x128xf32, #tpu.memory_space<vmem>>, vector<4x8x128xf32>
    %5 = arith.index_cast %arg0 : i32 to index
    %c0_5 = arith.constant 0 : index
    %6 = memref.load %arg1[%5, %c0_5] : memref<6x4xi32, #tpu.memory_space<smem>>
    %7 = arith.index_cast %6 : i32 to index
    %c0_6 = arith.constant 0 : index
    %8 = vector.load %arg4[%7, %c0_6] : memref<128x64xf32, #tpu.memory_space<vmem>>, vector<1x64xf32>
    %c0_7 = arith.constant 0 : index
    %c0_8 = arith.constant 0 : index
    %9 = vector.load %arg13[%c0_7, %c0_8] : memref<4x64xf32, #tpu.memory_space<vmem>>, vector<1x64xf32>
    tpu.vector_store %arg13[%c0_7, %c0_8], %8 {strides = array<i32>} : memref<4x64xf32, #tpu.memory_space<vmem>>, vector<1x64xf32>,
    %10 = arith.index_cast %arg0 : i32 to index
    %c1 = arith.constant 1 : index
    %11 = memref.load %arg1[%10, %c1] : memref<6x4xi32, #tpu.memory_space<smem>>
    %12 = arith.index_cast %11 : i32 to index
    %c0_9 = arith.constant 0 : index
    %13 = vector.load %arg4[%12, %c0_9] : memref<128x64xf32, #tpu.memory_space<vmem>>, vector<1x64xf32>
    %c1_10 = arith.constant 1 : index
    %c0_11 = arith.constant 0 : index
    %14 = vector.load %arg13[%c1_10, %c0_11] : memref<4x64xf32, #tpu.memory_space<vmem>>, vector<1x64xf32>
    tpu.vector_store %arg13[%c1_10, %c0_11], %13 {strides = array<i32>} : memref<4x64xf32, #tpu.memory_space<vmem>>, vector<1x64xf32>,
    %15 = arith.index_cast %arg0 : i32 to index
    %c2 = arith.constant 2 : index
    %16 = memref.load %arg1[%15, %c2] : memref<6x4xi32, #tpu.memory_space<smem>>
    %17 = arith.index_cast %16 : i32 to index
    %c0_12 = arith.constant 0 : index
    %18 = vector.load %arg4[%17, %c0_12] : memref<128x64xf32, #tpu.memory_space<vmem>>, vector<1x64xf32>
    %c2_13 = arith.constant 2 : index
    %c0_14 = arith.constant 0 : index
    %19 = vector.load %arg13[%c2_13, %c0_14] : memref<4x64xf32, #tpu.memory_space<vmem>>, vector<1x64xf32>
    tpu.vector_store %arg13[%c2_13, %c0_14], %18 {strides = array<i32>} : memref<4x64xf32, #tpu.memory_space<vmem>>, vector<1x64xf32>,
    %20 = arith.index_cast %arg0 : i32 to index
    %c3 = arith.constant 3 : index
    %21 = memref.load %arg1[%20, %c3] : memref<6x4xi32, #tpu.memory_space<smem>>
    %22 = arith.index_cast %21 : i32 to index
    %c0_15 = arith.constant 0 : index
    %23 = vector.load %arg4[%22, %c0_15] : memref<128x64xf32, #tpu.memory_space<vmem>>, vector<1x64xf32>
    %c3_16 = arith.constant 3 : index
    %c0_17 = arith.constant 0 : index
    %24 = vector.load %arg13[%c3_16, %c0_17] : memref<4x64xf32, #tpu.memory_space<vmem>>, vector<1x64xf32>
    tpu.vector_store %arg13[%c3_16, %c0_17], %23 {strides = array<i32>} : memref<4x64xf32, #tpu.memory_space<vmem>>, vector<1x64xf32>,
    %c0_18 = arith.constant 0 : index
    %c0_19 = arith.constant 0 : index
    %25 = vector.load %arg13[%c0_18, %c0_19] : memref<4x64xf32, #tpu.memory_space<vmem>>, vector<4x64xf32>
    %26 = vector.shape_cast %3 : vector<4x128xf32> to vector<4x1x128xf32>
    %27 = vector.broadcast %26 : vector<4x1x128xf32> to vector<4x8x128xf32>
    %28 = arith.mulf %4, %27 : vector<4x8x128xf32>
    %cst = arith.constant dense<0.000000e+00> : vector<4x8xf32>
    %29 = vector.multi_reduction <add>, %28, %cst [2] : vector<4x8x128xf32> to vector<4x8xf32>
    %cst_20 = arith.constant dense<0xFF800000> : vector<4xf32>
    %30 = vector.multi_reduction <maximumf>, %29, %cst_20 [1] : vector<4x8xf32> to vector<4xf32>
    %31 = vector.shape_cast %30 : vector<4xf32> to vector<4x1xf32>
    %32 = vector.broadcast %31 : vector<4x1xf32> to vector<4x8xf32>
    %33 = arith.subf %29, %32 : vector<4x8xf32>
    %34 = math.exp %33 : vector<4x8xf32>
    %cst_21 = arith.constant dense<0.000000e+00> : vector<4xf32>
    %35 = vector.multi_reduction <add>, %34, %cst_21 [1] : vector<4x8xf32> to vector<4xf32>
    %36 = vector.shape_cast %35 : vector<4xf32> to vector<4x1xf32>
    %37 = tpu.reciprocal %36 : vector<4x1xf32> -> vector<4x1xf32>
    %38 = vector.broadcast %37 : vector<4x1xf32> to vector<4x8xf32>
    %39 = arith.mulf %34, %38 : vector<4x8xf32>
    %c0_22 = arith.constant 0 : index
    %c0_23 = arith.constant 0 : index
    %c0_24 = arith.constant 0 : index
    %40 = vector.load %arg11[%c0_22, %c0_23, %c0_24] : memref<1x4x8xf32, #tpu.memory_space<vmem>>, vector<1x4x8xf32>
    %41 = vector.shape_cast %40 : vector<1x4x8xf32> to vector<4x8xf32>
    %42 = vector.shape_cast %39 : vector<4x8xf32> to vector<1x4x8xf32>
    tpu.vector_store %arg11[%c0_22, %c0_23, %c0_24], %42 {strides = array<i32>} : memref<1x4x8xf32, #tpu.memory_space<vmem>>, vector<1x4x8xf32>,
    %43 = vector.shape_cast %39 : vector<4x8xf32> to vector<4x8x1xf32>
    %44 = vector.broadcast %43 : vector<4x8x1xf32> to vector<4x8x128xf32>
    %45 = arith.mulf %44, %4 : vector<4x8x128xf32>
    %cst_25 = arith.constant dense<0.000000e+00> : vector<4x128xf32>
    %46 = vector.multi_reduction <add>, %45, %cst_25 [1] : vector<4x8x128xf32> to vector<4x128xf32>
    %47 = tpu.concatenate %46, %3, %25 in 1 : vector<4x128xf32>, vector<4x128xf32>, vector<4x64xf32> -> vector<4x320xf32>
    %48 = arith.truncf %47 : vector<4x320xf32> to vector<4x320xbf16>
    %c0_26 = arith.constant 0 : index
    %c0_27 = arith.constant 0 : index
    %49 = vector.load %arg5[%c0_26, %c0_27] : memref<320x512xbf16, #tpu.memory_space<vmem>>, vector<320x512xbf16>
    %cst_28 = arith.constant dense<0.000000e+00> : vector<4x512xf32>
    %50 = tpu.matmul %48, %49, %cst_28 {dimension_numbers = #tpu.dot_dimension_numbers<[1], [0], [0], [1], [0, 0, 1, 1], [], []>} : vector<4x320xbf16>, vector<320x512xbf16>, vector<4x512xf32> -> vector<4x512xf32>
    %c0_29 = arith.constant 0 : index
    %c0_30 = arith.constant 0 : index
    %51 = vector.load %arg6[%c0_29, %c0_30] : memref<1x512xf32, #tpu.memory_space<vmem>>, vector<1x512xf32>
    %52 = vector.broadcast %51 : vector<1x512xf32> to vector<4x512xf32>
    %53 = arith.addf %50, %52 : vector<4x512xf32>
    %54 = vector.extract_strided_slice %53 {offsets = [0, 0], sizes = [4, 128], strides = [1, 1]} : vector<4x512xf32> to vector<4x128xf32>
    %55 = arith.negf %54 : vector<4x128xf32>
    %56 = math.exp %55 : vector<4x128xf32>
    %cst_31 = arith.constant 1.000000e+00 : f32
    %57 = vector.broadcast %cst_31 : f32 to vector<4x128xf32>
    %58 = arith.addf %57, %56 : vector<4x128xf32>
    %59 = arith.divf %57, %58 : vector<4x128xf32>
    %60 = vector.extract_strided_slice %53 {offsets = [0, 128], sizes = [4, 128], strides = [1, 1]} : vector<4x512xf32> to vector<4x128xf32>
    %61 = arith.negf %60 : vector<4x128xf32>
    %62 = math.exp %61 : vector<4x128xf32>
    %cst_32 = arith.constant 1.000000e+00 : f32
    %63 = vector.broadcast %cst_32 : f32 to vector<4x128xf32>
    %64 = arith.addf %63, %62 : vector<4x128xf32>
    %65 = arith.divf %63, %64 : vector<4x128xf32>
    %66 = vector.extract_strided_slice %53 {offsets = [0, 256], sizes = [4, 128], strides = [1, 1]} : vector<4x512xf32> to vector<4x128xf32>
    %67 = vector.extract_strided_slice %53 {offsets = [0, 384], sizes = [4, 128], strides = [1, 1]} : vector<4x512xf32> to vector<4x128xf32>
    %68 = arith.mulf %59, %67 : vector<4x128xf32>
    %69 = arith.addf %66, %68 : vector<4x128xf32>
    %70 = math.tanh %69 : vector<4x128xf32>
    %cst_33 = arith.constant 1.000000e+00 : f32
    %71 = vector.broadcast %cst_33 : f32 to vector<4x128xf32>
    %72 = arith.subf %71, %65 : vector<4x128xf32>
    %73 = arith.mulf %72, %70 : vector<4x128xf32>
    %74 = arith.mulf %65, %3 : vector<4x128xf32>
    %75 = arith.addf %73, %74 : vector<4x128xf32>
    %c0_34 = arith.constant 0 : index
    %c0_35 = arith.constant 0 : index
    %76 = vector.load %arg12[%c0_34, %c0_35] : memref<4x128xf32, #tpu.memory_space<vmem>>, vector<4x128xf32>
    tpu.vector_store %arg12[%c0_34, %c0_35], %75 {strides = array<i32>} : memref<4x128xf32, #tpu.memory_space<vmem>>, vector<4x128xf32>,
    %c0_36 = arith.constant 0 : index
    %c0_37 = arith.constant 0 : index
    %77 = vector.load %arg10[%c0_36, %c0_37] : memref<4x128xf32, #tpu.memory_space<vmem>>, vector<4x128xf32>
    tpu.vector_store %arg10[%c0_36, %c0_37], %75 {strides = array<i32>} : memref<4x128xf32, #tpu.memory_space<vmem>>, vector<4x128xf32>,
    %78 = arith.truncf %75 : vector<4x128xf32> to vector<4x128xbf16>
    %c0_38 = arith.constant 0 : index
    %c0_39 = arith.constant 0 : index
    %79 = vector.load %arg7[%c0_38, %c0_39] : memref<128x128xbf16, #tpu.memory_space<vmem>>, vector<128x128xbf16>
    %cst_40 = arith.constant dense<0.000000e+00> : vector<4x128xf32>
    %80 = tpu.matmul %78, %79, %cst_40 {dimension_numbers = #tpu.dot_dimension_numbers<[1], [0], [0], [1], [0, 0, 1, 1], [], []>} : vector<4x128xbf16>, vector<128x128xbf16>, vector<4x128xf32> -> vector<4x128xf32>
    %c0_41 = arith.constant 0 : index
    %c0_42 = arith.constant 0 : index
    %81 = vector.load %arg8[%c0_41, %c0_42] : memref<1x128xf32, #tpu.memory_space<vmem>>, vector<1x128xf32>
    %82 = vector.broadcast %81 : vector<1x128xf32> to vector<4x128xf32>
    %83 = arith.addf %80, %82 : vector<4x128xf32>
    %cst_43 = arith.constant dense<0xFF800000> : vector<4xf32>
    %84 = vector.multi_reduction <maximumf>, %83, %cst_43 [1] : vector<4x128xf32> to vector<4xf32>
    %85 = vector.shape_cast %84 : vector<4xf32> to vector<4x1xf32>
    %86 = vector.broadcast %85 : vector<4x1xf32> to vector<4x128xf32>
    %87 = arith.subf %83, %86 : vector<4x128xf32>
    %88 = math.exp %87 : vector<4x128xf32>
    %cst_44 = arith.constant dense<0.000000e+00> : vector<4xf32>
    %89 = vector.multi_reduction <add>, %88, %cst_44 [1] : vector<4x128xf32> to vector<4xf32>
    %90 = vector.shape_cast %89 : vector<4xf32> to vector<4x1xf32>
    %91 = math.log %90 : vector<4x1xf32>
    %92 = vector.broadcast %85 : vector<4x1xf32> to vector<4x128xf32>
    %93 = arith.subf %83, %92 : vector<4x128xf32>
    %94 = vector.broadcast %91 : vector<4x1xf32> to vector<4x128xf32>
    %95 = arith.subf %93, %94 : vector<4x128xf32>
    %c0_45 = arith.constant 0 : index
    %c0_46 = arith.constant 0 : index
    %c0_47 = arith.constant 0 : index
    %96 = vector.load %arg9[%c0_45, %c0_46, %c0_47] : memref<1x4x128xf32, #tpu.memory_space<vmem>>, vector<1x4x128xf32>
    %97 = vector.shape_cast %96 : vector<1x4x128xf32> to vector<4x128xf32>
    %98 = vector.shape_cast %95 : vector<4x128xf32> to vector<1x4x128xf32>
    tpu.vector_store %arg9[%c0_45, %c0_46, %c0_47], %98 {strides = array<i32>} : memref<1x4x128xf32, #tpu.memory_space<vmem>>, vector<1x4x128xf32>,
    return
  }
  func.func @transform_0(%arg0: i32, %arg1: memref<6x4xi32, #tpu.memory_space<smem>>) -> (i32, i32) {
    %c0_i32 = arith.constant 0 : i32
    %c0_i32_0 = arith.constant 0 : i32
    %c0_i32_1 = arith.constant 0 : i32
    return %c0_i32, %c0_i32_0 : i32, i32
  }
  func.func @transform_1(%arg0: i32, %arg1: memref<6x4xi32, #tpu.memory_space<smem>>) -> (i32, i32, i32) {
    %c0_i32 = arith.constant 0 : i32
    %c0_i32_0 = arith.constant 0 : i32
    %c0_i32_1 = arith.constant 0 : i32
    %c0_i32_2 = arith.constant 0 : i32
    return %c0_i32, %c0_i32_0, %c0_i32_1 : i32, i32, i32
  }
  func.func @transform_2(%arg0: i32, %arg1: memref<6x4xi32, #tpu.memory_space<smem>>) -> (i32, i32) {
    %c0_i32 = arith.constant 0 : i32
    %c0_i32_0 = arith.constant 0 : i32
    %c0_i32_1 = arith.constant 0 : i32
    return %c0_i32, %c0_i32_0 : i32, i32
  }
  func.func @transform_3(%arg0: i32, %arg1: memref<6x4xi32, #tpu.memory_space<smem>>) -> (i32, i32) {
    %c0_i32 = arith.constant 0 : i32
    %c0_i32_0 = arith.constant 0 : i32
    %c0_i32_1 = arith.constant 0 : i32
    return %c0_i32, %c0_i32_0 : i32, i32
  }
  func.func @transform_4(%arg0: i32, %arg1: memref<6x4xi32, #tpu.memory_space<smem>>) -> (i32, i32) {
    %c0_i32 = arith.constant 0 : i32
    %c0_i32_0 = arith.constant 0 : i32
    %c0_i32_1 = arith.constant 0 : i32
    return %c0_i32, %c0_i32_0 : i32, i32
  }
  func.func @transform_5(%arg0: i32, %arg1: memref<6x4xi32, #tpu.memory_space<smem>>) -> (i32, i32) {
    %c0_i32 = arith.constant 0 : i32
    %c0_i32_0 = arith.constant 0 : i32
    %c0_i32_1 = arith.constant 0 : i32
    return %c0_i32, %c0_i32_0 : i32, i32
  }
  func.func @transform_6(%arg0: i32, %arg1: memref<6x4xi32, #tpu.memory_space<smem>>) -> (i32, i32) {
    %c0_i32 = arith.constant 0 : i32
    %c0_i32_0 = arith.constant 0 : i32
    %c0_i32_1 = arith.constant 0 : i32
    return %c0_i32, %c0_i32_0 : i32, i32
  }
  func.func @transform_7(%arg0: i32, %arg1: memref<6x4xi32, #tpu.memory_space<smem>>) -> (i32, i32, i32) {
    %c0_i32 = arith.constant 0 : i32
    %c0_i32_0 = arith.constant 0 : i32
    %c0_i32_1 = arith.constant 0 : i32
    return %arg0, %c0_i32, %c0_i32_0 : i32, i32, i32
  }
  func.func @transform_8(%arg0: i32, %arg1: memref<6x4xi32, #tpu.memory_space<smem>>) -> (i32, i32) {
    %c0_i32 = arith.constant 0 : i32
    %c0_i32_0 = arith.constant 0 : i32
    %c0_i32_1 = arith.constant 0 : i32
    return %c0_i32, %c0_i32_0 : i32, i32
  }
  func.func @transform_9(%arg0: i32, %arg1: memref<6x4xi32, #tpu.memory_space<smem>>) -> (i32, i32, i32) {
    %c0_i32 = arith.constant 0 : i32
    %c0_i32_0 = arith.constant 0 : i32
    %c0_i32_1 = arith.constant 0 : i32
    return %arg0, %c0_i32, %c0_i32_0 : i32, i32, i32
  }
}

</mosaic_0001>

<llo_original>
// kernel: tpu_custom_call.1
$region0: #{tpu_custom_call.1}
  #allocation0 [shape = 'u32[]', space=smem, size = 0x4, offset = 0x4, fixed_abs, tag = 'smem constant byte address 0x4 - core index']
  #allocation1 [shape = 'u32[144,128]{1,0:T(1,128)}', space=vmem, size = 0x12000, scoped, tag = 'internal scratch']
  #allocation2 [shape = 'f32[4,128]{1,0:T(4,128)}', space=vmem, size = 0x800, scoped, tag = 'scratch operand']
  #allocation3 [shape = 'f32[4,64]{1,0:T(4,128)}', space=vmem, size = 0x800, scoped, tag = 'scratch operand']
  #allocation4 [shape = 's32[1]{0}', space=sflag, size = 0x4, scoped, tag = 'scoped memory for tpu_custom_call.1']
  #allocation5 [shape = 'u8[4096]{0}', space=smem, size = 0x1000, scoped, tag = 'prefetched SMEM operand 0']
  %s0 = inlined_call_operand.vmem [shape: s32[6,4], index: 0, kind: input, shape index: {}]
  %s1 = inlined_call_operand.vmem [shape: f32[4,128], index: 1, kind: input, shape index: {}]
  %s2 = inlined_call_operand.vmem [shape: f32[4,8,128], index: 2, kind: input, shape index: {}]
  %s3 = inlined_call_operand.vmem [shape: f32[128,64], index: 3, kind: input, shape index: {}]
  %s4 = inlined_call_operand.hbm [shape: bf16[320,512], index: 4, kind: input, shape index: {}]
  %s5 = inlined_call_operand.vmem [shape: f32[1,512], index: 5, kind: input, shape index: {}]
  %s6 = inlined_call_operand.vmem [shape: bf16[128,128], index: 6, kind: input, shape index: {}]
  %s7 = inlined_call_operand.vmem [shape: f32[1,128], index: 7, kind: input, shape index: {}]
  %s8 = inlined_call_operand.hbm [shape: f32[6,4,128], index: 8, kind: output, shape index: {0}]
  %s9 = inlined_call_operand.hbm [shape: f32[4,128], index: 9, kind: output, shape index: {1}]
  %s10 = inlined_call_operand.hbm [shape: f32[6,4,8], index: 10, kind: output, shape index: {2}]
  %11 = xla_tuple %s8, %s9, %s10
  %s12 = sld [smem:[#allocation0]]
  $region85: #{tpu_custom_call.1} parent=0
    _
  %s14 = ssub.s32 1, %s12
  %s15 = scalar_select 0, %s14, %s12
  %s16 = sshll.u32 %s0, 4
  %s17 = int_to_ptr.vmem [resolvable:$true] %s16
  %19 = dma.vmem_to_smem %s17, 128, [#allocation5], [#allocation4]
  %20 = dma.done [#allocation4], 128
  %21 = sfence
  $region1: #{tpu_custom_call.1} parent=0
    #allocation6 [shape = 'u8[327680]{0}', space=vmem, size = 0x50000, scoped, tag = 'input window, operand 4, single buffered']
    #allocation7 [shape = 's32[2]{0}', space=sflag, size = 0x8, scoped, tag = 'scoped memory for tpu_custom_call.1']
    #allocation8 [shape = 's32[2]{0}', space=sflag, size = 0x8, scoped, tag = 'scoped memory for tpu_custom_call.1']
    #allocation9 [shape = 'u8[4096]{0}', space=vmem, size = 0x1000, scoped, tag = 'output window, operand 0']
    #allocation10 [shape = 'u8[2048]{0}', space=vmem, size = 0x800, scoped, tag = 'output window, operand 1, single buffered']
    #allocation11 [shape = 's32[1]{0}', space=sflag, size = 0x4, scoped, tag = 'scoped memory for tpu_custom_call.1']
    #allocation12 [shape = 'u8[4096]{0}', space=vmem, size = 0x1000, scoped, tag = 'output window, operand 2']
    %22 = vsyncpa [#allocation7], 0
    %23 = vsyncpa [#allocation8], 0
    %s24 = scalar_lea.sflag [#allocation8], 1
    %25 = vsyncpa %s24, 0
    %26 = vsyncpa [#allocation11], 0
    loop: start=0, step=1, limit=8
    $region2: #{tpu_custom_call.1} parent=1 // loop_pre_header
      _
    $region3: #{tpu_custom_call.1} parent=1 // loop_header
      %s28 = sphi 0, %s32
      %p29 = scmp.ge.s32.totalorder %s28, 8
      %s36 = sphi 0, %s36
      %s38 = sphi 0, %s36
      %s39 = sphi 0, %s38
      %s53 = sphi 0, %s39
      %s57 = sphi 0, %s57
      %s59 = sphi 0, %s57
      %s60 = sphi 0, %s59
      %s74 = sphi 0, %s60
      %s78 = sphi 0, %s78
      %s80 = sphi 0, %s78
      %s81 = sphi 0, %s80
      %s95 = sphi 0, %s81
      %s99 = sphi 0, %s99
      %s101 = sphi 0, %s99
      %s102 = sphi 0, %s101
      %s116 = sphi 0, %s102
      %s120 = sphi 0, %s120
      %s122 = sphi 0, %s120
      %s123 = sphi 0, %s122
      %s137 = sphi 0, %s123
      %s141 = sphi 0, %s141
      %s143 = sphi 0, %s141
      %s144 = sphi 0, %s143
      %s158 = sphi 0, %s144
      %s162 = sphi 0, %s162
      %s164 = sphi 0, %s162
      %s165 = sphi 0, %s164
      %s179 = sphi 0, %s165
      %s185 = sphi 0, %s187
      %s188 = sphi 0, %s185
      %s189 = sphi 0, %s188
      %s205 = sphi 0, %s189
      %s209 = sphi 0, %s209
      %s211 = sphi 0, %s209
      %s212 = sphi 0, %s211
      %s226 = sphi 0, %s212
      %s232 = sphi 0, %s234
      %s235 = sphi 0, %s232
      %s236 = sphi 0, %s235
      %s252 = sphi 0, %s236
    $region4: #{tpu_custom_call.1} parent=1 // loop_header_branch
      %31 = sbr.rel (%p29) target = $region8
    $region5: #{tpu_custom_call.1} parent=1 // loop_body
      %s33 = ssub.s32 %s28, 1
      %s34 = ssub.s32 %s28, 2
      %s35 = sadd.s32 %s28, 1
      %s37 = sadd.s32 %s36, 1
      %p40 = scmp.eq.s32.totalorder %s28, 5
      %p41 = scmp.ne.s32.totalorder %s36, %s38
      %p42 = scmp.eq.s32.totalorder %s28, 0
      %p43 = por %p41, %p42
      %p44 = scmp.ne.s32.totalorder %s36, %s38
      %p45 = scmp.eq.s32.totalorder %s33, 5
      %p46 = por %p44, %p45
      %p47 = scmp.ne.s32.totalorder %s38, %s39
      %p48 = scmp.eq.s32.totalorder %s33, 0
      %p49 = por %p47, %p48
      %p50 = scmp.ne.s32.totalorder %s38, %s39
      %p51 = scmp.eq.s32.totalorder %s34, 5
      %p52 = por %p50, %p51
      %p54 = scmp.ne.s32.totalorder %s39, %s53
      %p55 = scmp.eq.s32.totalorder %s34, 0
      %p56 = por %p54, %p55
      %s58 = sadd.s32 %s57, 1
      %p61 = scmp.eq.s32.totalorder %s28, 5
      %p62 = scmp.ne.s32.totalorder %s57, %s59
      %p63 = scmp.eq.s32.totalorder %s28, 0
      %p64 = por %p62, %p63
      %p65 = scmp.ne.s32.totalorder %s57, %s59
      %p66 = scmp.eq.s32.totalorder %s33, 5
      %p67 = por %p65, %p66
      %p68 = scmp.ne.s32.totalorder %s59, %s60
      %p69 = scmp.eq.s32.totalorder %s33, 0
      %p70 = por %p68, %p69
      %p71 = scmp.ne.s32.totalorder %s59, %s60
      %p72 = scmp.eq.s32.totalorder %s34, 5
      %p73 = por %p71, %p72
      %p75 = scmp.ne.s32.totalorder %s60, %s74
      %p76 = scmp.eq.s32.totalorder %s34, 0
      %p77 = por %p75, %p76
      %s79 = sadd.s32 %s78, 1
      %p82 = scmp.eq.s32.totalorder %s28, 5
      %p83 = scmp.ne.s32.totalorder %s78, %s80
      %p84 = scmp.eq.s32.totalorder %s28, 0
      %p85 = por %p83, %p84
      %p86 = scmp.ne.s32.totalorder %s78, %s80
      %p87 = scmp.eq.s32.totalorder %s33, 5
      %p88 = por %p86, %p87
      %p89 = scmp.ne.s32.totalorder %s80, %s81
      %p90 = scmp.eq.s32.totalorder %s33, 0
      %p91 = por %p89, %p90
      %p92 = scmp.ne.s32.totalorder %s80, %s81
      %p93 = scmp.eq.s32.totalorder %s34, 5
      %p94 = por %p92, %p93
      %p96 = scmp.ne.s32.totalorder %s81, %s95
      %p97 = scmp.eq.s32.totalorder %s34, 0
      %p98 = por %p96, %p97
      %s100 = sadd.s32 %s99, 1
      %p103 = scmp.eq.s32.totalorder %s28, 5
      %p104 = scmp.ne.s32.totalorder %s99, %s101
      %p105 = scmp.eq.s32.totalorder %s28, 0
      %p106 = por %p104, %p105
      %p107 = scmp.ne.s32.totalorder %s99, %s101
      %p108 = scmp.eq.s32.totalorder %s33, 5
      %p109 = por %p107, %p108
      %p110 = scmp.ne.s32.totalorder %s101, %s102
      %p111 = scmp.eq.s32.totalorder %s33, 0
      %p112 = por %p110, %p111
      %p113 = scmp.ne.s32.totalorder %s101, %s102
      %p114 = scmp.eq.s32.totalorder %s34, 5
      %p115 = por %p113, %p114
      %p117 = scmp.ne.s32.totalorder %s102, %s116
      %p118 = scmp.eq.s32.totalorder %s34, 0
      %p119 = por %p117, %p118
      %s121 = sadd.s32 %s120, 1
      %p124 = scmp.eq.s32.totalorder %s28, 5
      %p125 = scmp.ne.s32.totalorder %s120, %s122
      %p126 = scmp.eq.s32.totalorder %s28, 0
      %p127 = por %p125, %p126
      %p128 = scmp.ne.s32.totalorder %s120, %s122
      %p129 = scmp.eq.s32.totalorder %s33, 5
      %p130 = por %p128, %p129
      %p131 = scmp.ne.s32.totalorder %s122, %s123
      %p132 = scmp.eq.s32.totalorder %s33, 0
      %p133 = por %p131, %p132
      %p134 = scmp.ne.s32.totalorder %s122, %s123
      %p135 = scmp.eq.s32.totalorder %s34, 5
      %p136 = por %p134, %p135
      %p138 = scmp.ne.s32.totalorder %s123, %s137
      %p139 = scmp.eq.s32.totalorder %s34, 0
      %p140 = por %p138, %p139
      %s142 = sadd.s32 %s141, 1
      %p145 = scmp.eq.s32.totalorder %s28, 5
      %p146 = scmp.ne.s32.totalorder %s141, %s143
      %p147 = scmp.eq.s32.totalorder %s28, 0
      %p148 = por %p146, %p147
      %p149 = scmp.ne.s32.totalorder %s141, %s143
      %p150 = scmp.eq.s32.totalorder %s33, 5
      %p151 = por %p149, %p150
      %p152 = scmp.ne.s32.totalorder %s143, %s144
      %p153 = scmp.eq.s32.totalorder %s33, 0
      %p154 = por %p152, %p153
      %p155 = scmp.ne.s32.totalorder %s143, %s144
      %p156 = scmp.eq.s32.totalorder %s34, 5
      %p157 = por %p155, %p156
      %p159 = scmp.ne.s32.totalorder %s144, %s158
      %p160 = scmp.eq.s32.totalorder %s34, 0
      %p161 = por %p159, %p160
      %s163 = sadd.s32 %s162, 1
      %p166 = scmp.eq.s32.totalorder %s28, 5
      %p167 = scmp.ne.s32.totalorder %s162, %s164
      %p168 = scmp.eq.s32.totalorder %s28, 0
      %p169 = por %p167, %p168
      %p170 = scmp.ne.s32.totalorder %s162, %s164
      %p171 = scmp.eq.s32.totalorder %s33, 5
      %p172 = por %p170, %p171
      %p173 = scmp.ne.s32.totalorder %s164, %s165
      %p174 = scmp.eq.s32.totalorder %s33, 0
      %p175 = por %p173, %p174
      %p176 = scmp.ne.s32.totalorder %s164, %s165
      %p177 = scmp.eq.s32.totalorder %s34, 5
      %p178 = por %p176, %p177
      %p180 = scmp.ne.s32.totalorder %s165, %s179
      %p181 = scmp.eq.s32.totalorder %s34, 0
      %p182 = por %p180, %p181
      %s183 = ssub.s32 %s28, %s35
      %p184 = scmp.eq.s32.totalorder %s183, 0
      %s186 = sadd.s32 %s185, 1
      %s187 = scalar_select %p184, %s185, %s186
      %p190 = pneg %p184
      %p191 = scmp.eq.s32.totalorder %s28, 5
      %p192 = por %p190, %p191
      %p193 = scmp.ne.s32.totalorder %s185, %s188
      %p194 = scmp.eq.s32.totalorder %s28, 0
      %p195 = por %p193, %p194
      %p196 = scmp.ne.s32.totalorder %s185, %s188
      %p197 = scmp.eq.s32.totalorder %s33, 5
      %p198 = por %p196, %p197
      %p199 = scmp.ne.s32.totalorder %s188, %s189
      %p200 = scmp.eq.s32.totalorder %s33, 0
      %p201 = por %p199, %p200
      %p202 = scmp.ne.s32.totalorder %s188, %s189
      %p203 = scmp.eq.s32.totalorder %s34, 5
      %p204 = por %p202, %p203
      %p206 = scmp.ne.s32.totalorder %s189, %s205
      %p207 = scmp.eq.s32.totalorder %s34, 0
      %p208 = por %p206, %p207
      %s210 = sadd.s32 %s209, 1
      %p213 = scmp.eq.s32.totalorder %s28, 5
      %p214 = scmp.ne.s32.totalorder %s209, %s211
      %p215 = scmp.eq.s32.totalorder %s28, 0
      %p216 = por %p214, %p215
      %p217 = scmp.ne.s32.totalorder %s209, %s211
      %p218 = scmp.eq.s32.totalorder %s33, 5
      %p219 = por %p217, %p218
      %p220 = scmp.ne.s32.totalorder %s211, %s212
      %p221 = scmp.eq.s32.totalorder %s33, 0
      %p222 = por %p220, %p221
      %p223 = scmp.ne.s32.totalorder %s211, %s212
      %p224 = scmp.eq.s32.totalorder %s34, 5
      %p225 = por %p223, %p224
      %p227 = scmp.ne.s32.totalorder %s212, %s226
      %p228 = scmp.eq.s32.totalorder %s34, 0
      %p229 = por %p227, %p228
      %s230 = ssub.s32 %s28, %s35
      %p231 = scmp.eq.s32.totalorder %s230, 0
      %s233 = sadd.s32 %s232, 1
      %s234 = scalar_select %p231, %s232, %s233
      %p237 = pneg %p231
      %p238 = scmp.eq.s32.totalorder %s28, 5
      %p239 = por %p237, %p238
      %p240 = scmp.ne.s32.totalorder %s232, %s235
      %p241 = scmp.eq.s32.totalorder %s28, 0
      %p242 = por %p240, %p241
      %p243 = scmp.ne.s32.totalorder %s232, %s235
      %p244 = scmp.eq.s32.totalorder %s33, 5
      %p245 = por %p243, %p244
      %p246 = scmp.ne.s32.totalorder %s235, %s236
      %p247 = scmp.eq.s32.totalorder %s33, 0
      %p248 = por %p246, %p247
      %p249 = scmp.ne.s32.totalorder %s235, %s236
      %p250 = scmp.eq.s32.totalorder %s34, 5
      %p251 = por %p249, %p250
      %p253 = scmp.ne.s32.totalorder %s236, %s252
      %p254 = scmp.eq.s32.totalorder %s34, 0
      %p255 = por %p253, %p254
      %p256 = scmp.le.s32.totalorder 1, %s28
      %p257 = scmp.lt.s32.totalorder %s28, 7
      %p258 = pnand %p256, %p257
      %p259 = pneg %p258
      // Predicated region
      $region9: #{tpu_custom_call.1} parent=5 // pred_check
        _
      $region10: #{tpu_custom_call.1} parent=5 // pred_check_branch
        %261 = sbr.rel (%p258) target = $region12
      $region11: #{tpu_custom_call.1} parent=5 // pred_region
        %s262 = ssub.s32 %s28, 1
        // Predicated region
        $region13: #{tpu_custom_call.1} parent=11 // pred_check
          %p263 = pneg %p49
        $region14: #{tpu_custom_call.1} parent=11 // pred_check_branch
          %265 = sbr.rel (%p263) target = $region16
        $region15: #{tpu_custom_call.1} parent=11 // pred_region
          _
        $region16: #{tpu_custom_call.1} parent=11 // pred_fallthru
          _
        // Predicated region
        $region17: #{tpu_custom_call.1} parent=11 // pred_check
          %p266 = pneg %p70
        $region18: #{tpu_custom_call.1} parent=11 // pred_check_branch
          %268 = sbr.rel (%p266) target = $region20
        $region19: #{tpu_custom_call.1} parent=11 // pred_region
          _
        $region20: #{tpu_custom_call.1} parent=11 // pred_fallthru
          _
        // Predicated region
        $region21: #{tpu_custom_call.1} parent=11 // pred_check
          %p269 = pneg %p91
        $region22: #{tpu_custom_call.1} parent=11 // pred_check_branch
          %271 = sbr.rel (%p269) target = $region24
        $region23: #{tpu_custom_call.1} parent=11 // pred_region
          _
        $region24: #{tpu_custom_call.1} parent=11 // pred_fallthru
          _
        // Predicated region
        $region25: #{tpu_custom_call.1} parent=11 // pred_check
          %p272 = pneg %p112
        $region26: #{tpu_custom_call.1} parent=11 // pred_check_branch
          %274 = sbr.rel (%p272) target = $region28
        $region27: #{tpu_custom_call.1} parent=11 // pred_region
          %s276 = ssub.s32 10240, 10240
          %277 = vsyncadd [#allocation7], %s276
          %s278 = sshll.u32 [#allocation6], 4
          %s279 = int_to_ptr.vmem [resolvable:$true] %s278
          %284 = dma.hbm_to_vmem [thread:$0]  %s4, 10240, %s279, [#allocation7], 256, 256, 16
        $region28: #{tpu_custom_call.1} parent=11 // pred_fallthru
          _
        // Predicated region
        $region29: #{tpu_custom_call.1} parent=11 // pred_check
          %p285 = pneg %p133
        $region30: #{tpu_custom_call.1} parent=11 // pred_check_branch
          %287 = sbr.rel (%p285) target = $region32
        $region31: #{tpu_custom_call.1} parent=11 // pred_region
          _
        $region32: #{tpu_custom_call.1} parent=11 // pred_fallthru
          _
        // Predicated region
        $region33: #{tpu_custom_call.1} parent=11 // pred_check
          %p288 = pneg %p154
        $region34: #{tpu_custom_call.1} parent=11 // pred_check_branch
          %290 = sbr.rel (%p288) target = $region36
        $region35: #{tpu_custom_call.1} parent=11 // pred_region
          _
        $region36: #{tpu_custom_call.1} parent=11 // pred_fallthru
          _
        // Predicated region
        $region37: #{tpu_custom_call.1} parent=11 // pred_check
          %p291 = pneg %p175
        $region38: #{tpu_custom_call.1} parent=11 // pred_check_branch
          %293 = sbr.rel (%p291) target = $region40
        $region39: #{tpu_custom_call.1} parent=11 // pred_region
          _
        $region40: #{tpu_custom_call.1} parent=11 // pred_fallthru
          _
      $region12: #{tpu_custom_call.1} parent=5 // pred_fallthru
        _
      %p294 = scmp.lt.s32.totalorder %s28, 6
      // Predicated region
      $region41: #{tpu_custom_call.1} parent=5 // pred_check
        %p295 = pneg %p294
      $region42: #{tpu_custom_call.1} parent=5 // pred_check_branch
        %297 = sbr.rel (%p295) target = $region44
      $region43: #{tpu_custom_call.1} parent=5 // pred_region
        _
      $region44: #{tpu_custom_call.1} parent=5 // pred_fallthru
        _
      %p298 = scmp.le.s32.totalorder 1, %s28
      %p299 = scmp.lt.s32.totalorder %s28, 7
      %p300 = pnand %p298, %p299
      %p301 = pneg %p300
      // Predicated region
      $region45: #{tpu_custom_call.1} parent=5 // pred_check
        _
      $region46: #{tpu_custom_call.1} parent=5 // pred_check_branch
        %303 = sbr.rel (%p300) target = $region48
      $region47: #{tpu_custom_call.1} parent=5 // pred_region
        %s304 = ssub.s32 %s28, 1
        // Predicated region
        $region49: #{tpu_custom_call.1} parent=47 // pred_check
          %p305 = pneg %p112
        $region50: #{tpu_custom_call.1} parent=47 // pred_check_branch
          %307 = sbr.rel (%p305) target = $region52
        $region51: #{tpu_custom_call.1} parent=47 // pred_region
          %308 = dma.done [#allocation7], 10240
        $region52: #{tpu_custom_call.1} parent=47 // pred_fallthru
          _
        %p309 = pneg %p49
        %p310 = pneg %p46
        %p311 = pneg %p70
        %p312 = pneg %p67
        %p313 = pneg %p91
        %p314 = pneg %p88
        %p315 = pneg %p112
        %p316 = pneg %p109
        %p317 = pneg %p133
        %p318 = pneg %p130
        %p319 = pneg %p154
        %p320 = pneg %p151
        %p321 = pneg %p175
        %p322 = pneg %p172
        %p323 = pneg %p201
        %p324 = pneg %p198
        %s325 = sand.u32 %s33, 1
        %s326 = scalar_lea.sflag [#allocation8], %s325
        %s327 = sand.u32 %s188, 1
        %s328 = smul.addr %s327, 4
        %s329 = scalar_lea.vmem [#allocation9], %s328
        %p330 = pneg %p222
        %p331 = pneg %p219
        %p332 = pneg %p248
        %p333 = pneg %p245
        %s334 = sand.u32 %s33, 1
        %s335 = scalar_lea.sflag [#allocation8], %s334
        %s336 = sand.u32 %s235, 1
        %s337 = smul.addr %s336, 4
        %s338 = scalar_lea.vmem [#allocation12], %s337
        %p340 = scmp.eq.s32.totalorder %s33, 0
        // Predicated region
        $region53: #{tpu_custom_call.1} parent=47 // pred_check
          %p341 = pneg %p340
        $region54: #{tpu_custom_call.1} parent=47 // pred_check_branch
          %343 = sbr.rel (%p341) target = $region56
        $region55: #{tpu_custom_call.1} parent=47 // pred_region
          %v344 = vld [vmem:[%s1] sm:$0xf]
          %345 = vst [vmem:[#allocation2] sm:$0xf] %v344
        $region56: #{tpu_custom_call.1} parent=47 // pred_fallthru
          _
        %v346 = vld [vmem:[#allocation2] sm:$0xf]
        %v347 = vld [vmem:[%s2] sm:$0xff]
        %v348 = vld [vmem:[%s2 + $0x8] sm:$0xff]
        %v349 = vld [vmem:[%s2 + $0x10] sm:$0xff]
        %v350 = vld [vmem:[%s2 + $0x18] sm:$0xff]
        %s351 = smul.u32 %s33, 128
        %s352 = sld [smem:[#allocation5 + %s351]]
        %s353 = scalar_lea.vmem %s3, %s352
        %v354 = vld [vmem:[%s353] sm:$0x1]
        %vm355 = vcmask 516096
        %356 = vst.msk [vmem:[#allocation3] sm:$0x1] %vm355, %v354
        %s357 = sadd.s32 %s351, 1
        %s358 = sld [smem:[#allocation5 + %s357]]
        %s359 = scalar_lea.vmem %s3, %s358
        %v360 = vld [vmem:[%s359] sm:$0x1]
        %361 = vst.msk [vmem:[#allocation3 + $0x1] sm:$0x1] %vm355, %v360
        %s362 = sadd.s32 %s351, 2
        %s363 = sld [smem:[#allocation5 + %s362]]
        %s364 = scalar_lea.vmem %s3, %s363
        %v365 = vld [vmem:[%s364] sm:$0x1]
        %366 = vst.msk [vmem:[#allocation3 + $0x2] sm:$0x1] %vm355, %v365
        %s367 = sadd.s32 %s351, 3
        %s368 = sld [smem:[#allocation5 + %s367]]
        %s369 = scalar_lea.vmem %s3, %s368
        %v370 = vld [vmem:[%s369] sm:$0x1]
        %371 = vst.msk [vmem:[#allocation3 + $0x3] sm:$0x1] %vm355, %v370
        %v372 = vld [vmem:[#allocation3] sm:$0xf]
        %v375 = vunpack.c.l.s4 1966171168
        %v376 = vunpack.c.0.s8 %v375
        %v377 = vlaneseq
        %v378 = vshrl.u32 %v377, 7
        %v379 = vsub.s32 %v376, %v378
        %v380 = vrot.slane %v346, %v379
        %v381 = vcombine.high %v380, %v380
        %v383 = vunpack.c.l.s4 1966171168
        %v384 = vunpack.c.0.s8 %v383
        %v385 = vlaneseq
        %v386 = vshrl.u32 %v385, 7
        %v387 = vsub.s32 %v384, %v386
        %v388 = vrot.slane %v380, %v387
        %v390 = vunpack.c.l.s4 1966171168
        %v391 = vunpack.c.0.s8 %v390
        %v392 = vlaneseq
        %v393 = vshrl.u32 %v392, 7
        %v394 = vsub.s32 %v391, %v393
        %v395 = vrot.slane %v381, %v394
        %v396 = vcombine.high %v388, %v388
        %v397 = vcombine.high %v395, %v395
        %v398 = vlaneseq
        %v399 = vshrl.u32 %v398, 7
        %v400 = vsub.s32 0, %v399
        %v401 = vrot.slane %v388, %v400
        %v402 = vlaneseq
        %v403 = vshrl.u32 %v402, 7
        %v404 = vsub.s32 0, %v403
        %v405 = vrot.slane %v395, %v404
        %v406 = vlaneseq
        %v407 = vshrl.u32 %v406, 7
        %v408 = vsub.s32 0, %v407
        %v409 = vrot.slane %v396, %v408
        %v410 = vlaneseq
        %v411 = vshrl.u32 %v410, 7
        %v412 = vsub.s32 0, %v411
        %v413 = vrot.slane %v397, %v412
        %v418 = vmul.f32 %v347, %v401
        %v419 = vmul.f32 %v348, %v405
        %v420 = vmul.f32 %v349, %v409
        %v421 = vmul.f32 %v350, %v413
        %422 = vadd.xlane.f32.xlu0 %v418
        %v423 = vpop.xlane.xlu0 %422
        %424 = vadd.xlane.f32.xlu0 %v419
        %v425 = vpop.xlane.xlu0 %424
        %426 = vadd.xlane.f32.xlu0 %v420
        %v427 = vpop.xlane.xlu0 %426
        %428 = vadd.xlane.f32.xlu0 %v421
        %v429 = vpop.xlane.xlu0 %428
        %v434 = vlaneseq
        %v435 = vand.u32 %v434, 127
        %v436 = vlaneseq
        %v437 = vshrl.u32 %v436, 7
        %v438 = vsub.s32 %v435, %v437
        %v439 = vrot.slane %v423, %v438
        %v440 = vlaneseq
        %v441 = vshrl.u32 %v440, 7
        %v442 = vsub.s32 %v435, %v441
        %v443 = vrot.slane %v425, %v442
        %v444 = vlaneseq
        %v445 = vshrl.u32 %v444, 7
        %v446 = vsub.s32 %v435, %v445
        %v447 = vrot.slane %v427, %v446
        %v448 = vlaneseq
        %v449 = vshrl.u32 %v448, 7
        %v450 = vsub.s32 %v435, %v449
        %v451 = vrot.slane %v429, %v450
        %vm452 = vcmask 1041409
        %v453 = vsel %vm452, %v443, %v439
        %vm454 = vcmask 1042434
        %v455 = vsel %vm454, %v447, %v453
        %vm456 = vcmask 1043459
        %v457 = vsel %vm456, %v451, %v455
        %vm459 = vcmask 60416
        %v460 = vsel %vm459, %v457, -inf
        %461 = vmax.xlane.f32.xlu0 %v460
        %v462 = vpop.xlane.xlu0 %461
        %v464 = vlaneseq
        %v465 = vshrl.u32 %v464, 7
        %v466 = vsub.s32 0, %v465
        %v467 = vrot.slane %v462, %v466
        %v468 = vlaneseq
        %v469 = vshrl.u32 %v468, 7
        %v470 = vsub.s32 1, %v469
        %v471 = vrot.slane %v462, %v470
        %v472 = vlaneseq
        %v473 = vshrl.u32 %v472, 7
        %v474 = vsub.s32 2, %v473
        %v475 = vrot.slane %v462, %v474
        %v476 = vlaneseq
        %v477 = vshrl.u32 %v476, 7
        %v478 = vsub.s32 3, %v477
        %v479 = vrot.slane %v462, %v478
        %v484 = vsub.f32 %v423, %v467
        %v485 = vsub.f32 %v425, %v471
        %v486 = vsub.f32 %v427, %v475
        %v487 = vsub.f32 %v429, %v479
        %v488 = vmul.f32 %v484, 1.442695
        %v489 = vpow.pop %v488
        %v490 = vmul.f32 %v485, 1.442695
        %v491 = vpow.pop %v490
        %v492 = vmul.f32 %v486, 1.442695
        %v493 = vpow.pop %v492
        %v494 = vmul.f32 %v487, 1.442695
        %v495 = vpow.pop %v494
        %500 = vset.pattern.permute.xlu0 0
        %501 = vperm.xlu0 %500, %v489
        %v502 = vpop.permute.xlu0 %501
        %503 = vset.pattern.permute.xlu0 0
        %504 = vperm.xlu0 %503, %v491
        %v505 = vpop.permute.xlu0 %504
        %506 = vset.pattern.permute.xlu0 0
        %507 = vperm.xlu0 %506, %v493
        %v508 = vpop.permute.xlu0 %507
        %509 = vset.pattern.permute.xlu0 0
        %510 = vperm.xlu0 %509, %v495
        %v511 = vpop.permute.xlu0 %510
        %v512 = vlaneseq
        %v513 = vshrl.u32 %v512, 7
        %v514 = vsub.s32 %v435, %v513
        %v515 = vrot.slane %v502, %v514
        %v516 = vlaneseq
        %v517 = vshrl.u32 %v516, 7
        %v518 = vsub.s32 %v435, %v517
        %v519 = vrot.slane %v505, %v518
        %v520 = vlaneseq
        %v521 = vshrl.u32 %v520, 7
        %v522 = vsub.s32 %v435, %v521
        %v523 = vrot.slane %v508, %v522
        %v524 = vlaneseq
        %v525 = vshrl.u32 %v524, 7
        %v526 = vsub.s32 %v435, %v525
        %v527 = vrot.slane %v511, %v526
        %v528 = vsel %vm452, %v519, %v515
        %v529 = vsel %vm454, %v523, %v528
        %v530 = vsel %vm456, %v527, %v529
        %v532 = vsel %vm459, %v530, 0.0
        %533 = vadd.xlane.f32.xlu0 %v532
        %v534 = vpop.xlane.xlu0 %533
        %v535 = vrcp.pop %v534
        %v537 = vlaneseq
        %v538 = vshrl.u32 %v537, 7
        %v539 = vsub.s32 0, %v538
        %v540 = vrot.slane %v535, %v539
        %v541 = vlaneseq
        %v542 = vshrl.u32 %v541, 7
        %v543 = vsub.s32 1, %v542
        %v544 = vrot.slane %v535, %v543
        %v545 = vlaneseq
        %v546 = vshrl.u32 %v545, 7
        %v547 = vsub.s32 2, %v546
        %v548 = vrot.slane %v535, %v547
        %v549 = vlaneseq
        %v550 = vshrl.u32 %v549, 7
        %v551 = vsub.s32 3, %v550
        %v552 = vrot.slane %v535, %v551
        %v557 = vmul.f32 %v489, %v540
        %v558 = vmul.f32 %v491, %v544
        %v559 = vmul.f32 %v493, %v548
        %v560 = vmul.f32 %v495, %v552
        %565 = vset.pattern.permute.xlu0 0
        %566 = vperm.xlu0 %565, %v557
        %v567 = vpop.permute.xlu0 %566
        %568 = vset.pattern.permute.xlu0 0
        %569 = vperm.xlu0 %568, %v558
        %v570 = vpop.permute.xlu0 %569
        %571 = vset.pattern.permute.xlu0 0
        %572 = vperm.xlu0 %571, %v559
        %v573 = vpop.permute.xlu0 %572
        %574 = vset.pattern.permute.xlu0 0
        %575 = vperm.xlu0 %574, %v560
        %v576 = vpop.permute.xlu0 %575
        %v577 = vlaneseq
        %v578 = vshrl.u32 %v577, 7
        %v579 = vsub.s32 %v435, %v578
        %v580 = vrot.slane %v567, %v579
        %v581 = vlaneseq
        %v582 = vshrl.u32 %v581, 7
        %v583 = vsub.s32 %v435, %v582
        %v584 = vrot.slane %v570, %v583
        %v585 = vlaneseq
        %v586 = vshrl.u32 %v585, 7
        %v587 = vsub.s32 %v435, %v586
        %v588 = vrot.slane %v573, %v587
        %v589 = vlaneseq
        %v590 = vshrl.u32 %v589, 7
        %v591 = vsub.s32 %v435, %v590
        %v592 = vrot.slane %v576, %v591
        %v593 = vsel %vm452, %v584, %v580
        %v594 = vsel %vm454, %v588, %v593
        %v595 = vsel %vm456, %v592, %v594
        %597 = vst.msk [vmem:[%s338] sm:$0xf] %vm459, %v595
        %v602 = vmul.f32 %v567, %v347
        %v603 = vmul.f32 %v570, %v348
        %v604 = vmul.f32 %v573, %v349
        %v605 = vmul.f32 %v576, %v350
        %v606 = vrot.slane %v602, 4
        %v607 = vadd.f32 %v602, %v606
        %v608 = vrot.slane %v607, 2
        %v609 = vadd.f32 %v607, %v608
        %v610 = vrot.slane %v609, 1
        %v611 = vadd.f32 %v609, %v610
        %v612 = vrot.slane %v603, 4
        %v613 = vadd.f32 %v603, %v612
        %v614 = vrot.slane %v613, 2
        %v615 = vadd.f32 %v613, %v614
        %v616 = vrot.slane %v615, 1
        %v617 = vadd.f32 %v615, %v616
        %v618 = vrot.slane %v604, 4
        %v619 = vadd.f32 %v604, %v618
        %v620 = vrot.slane %v619, 2
        %v621 = vadd.f32 %v619, %v620
        %v622 = vrot.slane %v621, 1
        %v623 = vadd.f32 %v621, %v622
        %v624 = vrot.slane %v605, 4
        %v625 = vadd.f32 %v605, %v624
        %v626 = vrot.slane %v625, 2
        %v627 = vadd.f32 %v625, %v626
        %v628 = vrot.slane %v627, 1
        %v629 = vadd.f32 %v627, %v628
        %v634 = vsel %vm452, %v617, %v611
        %v635 = vsel %vm454, %v623, %v634
        %v636 = vsel %vm456, %v629, %v635
        %v638 = vpack.c.bf16 %v636, %v636
        %v639 = vpack.c.bf16 %v346, %v346
        %v640 = vpack.c.bf16 %v372, %v372
        %v641 = vld [vmem:[#allocation6] sm:$0xff]
        %v642 = vld [vmem:[#allocation6 + $0x8] sm:$0xff]
        %v643 = vld [vmem:[#allocation6 + $0x10] sm:$0xff]
        %v644 = vld [vmem:[#allocation6 + $0x18] sm:$0xff]
        %v645 = vld [vmem:[#allocation6 + $0x20] sm:$0xff]
        %v646 = vld [vmem:[#allocation6 + $0x28] sm:$0xff]
        %v647 = vld [vmem:[#allocation6 + $0x30] sm:$0xff]
        %v648 = vld [vmem:[#allocation6 + $0x38] sm:$0xff]
        %v649 = vld [vmem:[#allocation6 + $0x40] sm:$0xff]
        %v650 = vld [vmem:[#allocation6 + $0x48] sm:$0xff]
        %v651 = vld [vmem:[#allocation6 + $0x50] sm:$0xff]
        %v652 = vld [vmem:[#allocation6 + $0x58] sm:$0xff]
        %v653 = vld [vmem:[#allocation6 + $0x60] sm:$0xff]
        %v654 = vld [vmem:[#allocation6 + $0x68] sm:$0xff]
        %v655 = vld [vmem:[#allocation6 + $0x70] sm:$0xff]
        %v656 = vld [vmem:[#allocation6 + $0x78] sm:$0xff]
        %v657 = vld [vmem:[#allocation6 + $0x80] sm:$0xff]
        %v658 = vld [vmem:[#allocation6 + $0x88] sm:$0xff]
        %v659 = vld [vmem:[#allocation6 + $0x90] sm:$0xff]
        %v660 = vld [vmem:[#allocation6 + $0x98] sm:$0xff]
        %v661 = vld [vmem:[#allocation6 + $0xa0] sm:$0xff]
        %v662 = vld [vmem:[#allocation6 + $0xa8] sm:$0xff]
        %v663 = vld [vmem:[#allocation6 + $0xb0] sm:$0xff]
        %v664 = vld [vmem:[#allocation6 + $0xb8] sm:$0xff]
        %v665 = vld [vmem:[#allocation6 + $0xc0] sm:$0xff]
        %v666 = vld [vmem:[#allocation6 + $0xc8] sm:$0xff]
        %v667 = vld [vmem:[#allocation6 + $0xd0] sm:$0xff]
        %v668 = vld [vmem:[#allocation6 + $0xd8] sm:$0xff]
        %v669 = vld [vmem:[#allocation6 + $0xe0] sm:$0xff]
        %v670 = vld [vmem:[#allocation6 + $0xe8] sm:$0xff]
        %v671 = vld [vmem:[#allocation6 + $0xf0] sm:$0xff]
        %v672 = vld [vmem:[#allocation6 + $0xf8] sm:$0xff]
        %v673 = vld [vmem:[#allocation6 + $0x100] sm:$0xff]
        %v674 = vld [vmem:[#allocation6 + $0x108] sm:$0xff]
        %v675 = vld [vmem:[#allocation6 + $0x110] sm:$0xff]
        %v676 = vld [vmem:[#allocation6 + $0x118] sm:$0xff]
        %v677 = vld [vmem:[#allocation6 + $0x120] sm:$0xff]
        %v678 = vld [vmem:[#allocation6 + $0x128] sm:$0xff]
        %v679 = vld [vmem:[#allocation6 + $0x130] sm:$0xff]
        %v680 = vld [vmem:[#allocation6 + $0x138] sm:$0xff]
        %v681 = vld [vmem:[#allocation6 + $0x140] sm:$0xff]
        %v682 = vld [vmem:[#allocation6 + $0x148] sm:$0xff]
        %v683 = vld [vmem:[#allocation6 + $0x150] sm:$0xff]
        %v684 = vld [vmem:[#allocation6 + $0x158] sm:$0xff]
        %v685 = vld [vmem:[#allocation6 + $0x160] sm:$0xff]
        %v686 = vld [vmem:[#allocation6 + $0x168] sm:$0xff]
        %v687 = vld [vmem:[#allocation6 + $0x170] sm:$0xff]
        %v688 = vld [vmem:[#allocation6 + $0x178] sm:$0xff]
        %v689 = vld [vmem:[#allocation6 + $0x180] sm:$0xff]
        %v690 = vld [vmem:[#allocation6 + $0x188] sm:$0xff]
        %v691 = vld [vmem:[#allocation6 + $0x190] sm:$0xff]
        %v692 = vld [vmem:[#allocation6 + $0x198] sm:$0xff]
        %v693 = vld [vmem:[#allocation6 + $0x1a0] sm:$0xff]
        %v694 = vld [vmem:[#allocation6 + $0x1a8] sm:$0xff]
        %v695 = vld [vmem:[#allocation6 + $0x1b0] sm:$0xff]
        %v696 = vld [vmem:[#allocation6 + $0x1b8] sm:$0xff]
        %v697 = vld [vmem:[#allocation6 + $0x1c0] sm:$0xff]
        %v698 = vld [vmem:[#allocation6 + $0x1c8] sm:$0xff]
        %v699 = vld [vmem:[#allocation6 + $0x1d0] sm:$0xff]
        %v700 = vld [vmem:[#allocation6 + $0x1d8] sm:$0xff]
        %v701 = vld [vmem:[#allocation6 + $0x1e0] sm:$0xff]
        %v702 = vld [vmem:[#allocation6 + $0x1e8] sm:$0xff]
        %v703 = vld [vmem:[#allocation6 + $0x1f0] sm:$0xff]
        %v704 = vld [vmem:[#allocation6 + $0x1f8] sm:$0xff]
        %v705 = vld [vmem:[#allocation6 + $0x200] sm:$0xff]
        %v706 = vld [vmem:[#allocation6 + $0x208] sm:$0xff]
        %v707 = vld [vmem:[#allocation6 + $0x210] sm:$0xff]
        %v708 = vld [vmem:[#allocation6 + $0x218] sm:$0xff]
        %v709 = vld [vmem:[#allocation6 + $0x220] sm:$0xff]
        %v710 = vld [vmem:[#allocation6 + $0x228] sm:$0xff]
        %v711 = vld [vmem:[#allocation6 + $0x230] sm:$0xff]
        %v712 = vld [vmem:[#allocation6 + $0x238] sm:$0xff]
        %v713 = vld [vmem:[#allocation6 + $0x240] sm:$0xff]
        %v714 = vld [vmem:[#allocation6 + $0x248] sm:$0xff]
        %v715 = vld [vmem:[#allocation6 + $0x250] sm:$0xff]
        %v716 = vld [vmem:[#allocation6 + $0x258] sm:$0xff]
        %v717 = vld [vmem:[#allocation6 + $0x260] sm:$0xff]
        %v718 = vld [vmem:[#allocation6 + $0x268] sm:$0xff]
        %v719 = vld [vmem:[#allocation6 + $0x270] sm:$0xff]
        %v720 = vld [vmem:[#allocation6 + $0x278] sm:$0xff]
        %v721 = vld [vmem:[%s5] sm:$0xf]
        %v723 = vlaneseq
        %v724 = vshrl.u32 %v723, 7
        %v725 = vsub.s32 0, %v724
        %v726 = vrot.slane %v721, %v725
        %v727 = vlaneseq
        %v728 = vshrl.u32 %v727, 7
        %v729 = vsub.s32 1, %v728
        %v730 = vrot.slane %v721, %v729
        %v731 = vlaneseq
        %v732 = vshrl.u32 %v731, 7
        %v733 = vsub.s32 2, %v732
        %v734 = vrot.slane %v721, %v733
        %v735 = vlaneseq
        %v736 = vshrl.u32 %v735, 7
        %v737 = vsub.s32 3, %v736
        %v738 = vrot.slane %v721, %v737
        %v823 = vunpack.c.l.b16 %v641
        %v824 = vunpack.c.h.b16 %v641
        %v825 = vunpack.c.l.b16 %v642
        %v826 = vunpack.c.h.b16 %v642
        %v827 = vunpack.c.l.b16 %v643
        %v828 = vunpack.c.h.b16 %v643
        %v829 = vunpack.c.l.b16 %v644
        %v830 = vunpack.c.h.b16 %v644
        %v831 = vunpack.c.l.b16 %v645
        %v832 = vunpack.c.h.b16 %v645
        %v833 = vunpack.c.l.b16 %v646
        %v834 = vunpack.c.h.b16 %v646
        %v835 = vunpack.c.l.b16 %v647
        %v836 = vunpack.c.h.b16 %v647
        %v837 = vunpack.c.l.b16 %v648
        %v838 = vunpack.c.h.b16 %v648
        %v839 = vunpack.c.l.b16 %v649
        %v840 = vunpack.c.h.b16 %v649
        %v841 = vunpack.c.l.b16 %v650
        %v842 = vunpack.c.h.b16 %v650
        %v843 = vunpack.c.l.b16 %v651
        %v844 = vunpack.c.h.b16 %v651
        %v845 = vunpack.c.l.b16 %v652
        %v846 = vunpack.c.h.b16 %v652
        %v847 = vunpack.c.l.b16 %v653
        %v848 = vunpack.c.h.b16 %v653
        %v849 = vunpack.c.l.b16 %v654
        %v850 = vunpack.c.h.b16 %v654
        %v851 = vunpack.c.l.b16 %v655
        %v852 = vunpack.c.h.b16 %v655
        %v853 = vunpack.c.l.b16 %v656
        %v854 = vunpack.c.h.b16 %v656
        %v855 = vunpack.c.l.b16 %v657
        %v856 = vunpack.c.h.b16 %v657
        %v857 = vunpack.c.l.b16 %v658
        %v858 = vunpack.c.h.b16 %v658
        %v859 = vunpack.c.l.b16 %v659
        %v860 = vunpack.c.h.b16 %v659
        %v861 = vunpack.c.l.b16 %v660
        %v862 = vunpack.c.h.b16 %v660
        %v863 = vunpack.c.l.b16 %v661
        %v864 = vunpack.c.h.b16 %v661
        %v865 = vunpack.c.l.b16 %v662
        %v866 = vunpack.c.h.b16 %v662
        %v867 = vunpack.c.l.b16 %v663
        %v868 = vunpack.c.h.b16 %v663
        %v869 = vunpack.c.l.b16 %v664
        %v870 = vunpack.c.h.b16 %v664
        %v871 = vunpack.c.l.b16 %v665
        %v872 = vunpack.c.h.b16 %v665
        %v873 = vunpack.c.l.b16 %v666
        %v874 = vunpack.c.h.b16 %v666
        %v875 = vunpack.c.l.b16 %v667
        %v876 = vunpack.c.h.b16 %v667
        %v877 = vunpack.c.l.b16 %v668
        %v878 = vunpack.c.h.b16 %v668
        %v879 = vunpack.c.l.b16 %v669
        %v880 = vunpack.c.h.b16 %v669
        %v881 = vunpack.c.l.b16 %v670
        %v882 = vunpack.c.h.b16 %v670
        %v883 = vunpack.c.l.b16 %v671
        %v884 = vunpack.c.h.b16 %v671
        %v885 = vunpack.c.l.b16 %v672
        %v886 = vunpack.c.h.b16 %v672
        %v887 = vunpack.c.l.b16 %v673
        %v888 = vunpack.c.h.b16 %v673
        %v889 = vunpack.c.l.b16 %v674
        %v890 = vunpack.c.h.b16 %v674
        %v891 = vunpack.c.l.b16 %v675
        %v892 = vunpack.c.h.b16 %v675
        %v893 = vunpack.c.l.b16 %v676
        %v894 = vunpack.c.h.b16 %v676
        %v895 = vunpack.c.l.b16 %v677
        %v896 = vunpack.c.h.b16 %v677
        %v897 = vunpack.c.l.b16 %v678
        %v898 = vunpack.c.h.b16 %v678
        %v899 = vunpack.c.l.b16 %v679
        %v900 = vunpack.c.h.b16 %v679
        %v901 = vunpack.c.l.b16 %v680
        %v902 = vunpack.c.h.b16 %v680
        %v903 = vunpack.c.l.b16 %v681
        %v904 = vunpack.c.h.b16 %v681
        %v905 = vunpack.c.l.b16 %v682
        %v906 = vunpack.c.h.b16 %v682
        %v907 = vunpack.c.l.b16 %v683
        %v908 = vunpack.c.h.b16 %v683
        %v909 = vunpack.c.l.b16 %v684
        %v910 = vunpack.c.h.b16 %v684
        %v911 = vunpack.c.l.b16 %v685
        %v912 = vunpack.c.h.b16 %v685
        %v913 = vunpack.c.l.b16 %v686
        %v914 = vunpack.c.h.b16 %v686
        %v915 = vunpack.c.l.b16 %v687
        %v916 = vunpack.c.h.b16 %v687
        %v917 = vunpack.c.l.b16 %v688
        %v918 = vunpack.c.h.b16 %v688
        %v919 = vunpack.c.l.b16 %v689
        %v920 = vunpack.c.h.b16 %v689
        %v921 = vunpack.c.l.b16 %v690
        %v922 = vunpack.c.h.b16 %v690
        %v923 = vunpack.c.l.b16 %v691
        %v924 = vunpack.c.h.b16 %v691
        %v925 = vunpack.c.l.b16 %v692
        %v926 = vunpack.c.h.b16 %v692
        %v927 = vunpack.c.l.b16 %v693
        %v928 = vunpack.c.h.b16 %v693
        %v929 = vunpack.c.l.b16 %v694
        %v930 = vunpack.c.h.b16 %v694
        %v931 = vunpack.c.l.b16 %v695
        %v932 = vunpack.c.h.b16 %v695
        %v933 = vunpack.c.l.b16 %v696
        %v934 = vunpack.c.h.b16 %v696
        %v935 = vunpack.c.l.b16 %v697
        %v936 = vunpack.c.h.b16 %v697
        %v937 = vunpack.c.l.b16 %v698
        %v938 = vunpack.c.h.b16 %v698
        %v939 = vunpack.c.l.b16 %v699
        %v940 = vunpack.c.h.b16 %v699
        %v941 = vunpack.c.l.b16 %v700
        %v942 = vunpack.c.h.b16 %v700
        %v943 = vunpack.c.l.b16 %v701
        %v944 = vunpack.c.h.b16 %v701
        %v945 = vunpack.c.l.b16 %v702
        %v946 = vunpack.c.h.b16 %v702
        %v947 = vunpack.c.l.b16 %v703
        %v948 = vunpack.c.h.b16 %v703
        %v949 = vunpack.c.l.b16 %v704
        %v950 = vunpack.c.h.b16 %v704
        %v951 = vunpack.c.l.b16 %v705
        %v952 = vunpack.c.h.b16 %v705
        %v953 = vunpack.c.l.b16 %v706
        %v954 = vunpack.c.h.b16 %v706
        %v955 = vunpack.c.l.b16 %v707
        %v956 = vunpack.c.h.b16 %v707
        %v957 = vunpack.c.l.b16 %v708
        %v958 = vunpack.c.h.b16 %v708
        %v959 = vunpack.c.l.b16 %v709
        %v960 = vunpack.c.h.b16 %v709
        %v961 = vunpack.c.l.b16 %v710
        %v962 = vunpack.c.h.b16 %v710
        %v963 = vunpack.c.l.b16 %v711
        %v964 = vunpack.c.h.b16 %v711
        %v965 = vunpack.c.l.b16 %v712
        %v966 = vunpack.c.h.b16 %v712
        %v967 = vunpack.c.l.b16 %v713
        %v968 = vunpack.c.h.b16 %v713
        %v969 = vunpack.c.l.b16 %v714
        %v970 = vunpack.c.h.b16 %v714
        %v971 = vunpack.c.l.b16 %v715
        %v972 = vunpack.c.h.b16 %v715
        %v973 = vunpack.c.l.b16 %v716
        %v974 = vunpack.c.h.b16 %v716
        %v975 = vunpack.c.l.b16 %v717
        %v976 = vunpack.c.h.b16 %v717
        %v977 = vunpack.c.l.b16 %v718
        %v978 = vunpack.c.h.b16 %v718
        %v979 = vunpack.c.l.b16 %v719
        %v980 = vunpack.c.h.b16 %v719
        %v981 = vunpack.c.l.b16 %v720
        %v982 = vunpack.c.h.b16 %v720
        %v983 = vpack.c.b16 %v827, %v823
        %v984 = vpack.c.b16 %v828, %v824
        %v985 = vpack.c.b16 %v829, %v825
        %v986 = vpack.c.b16 %v830, %v826
        %v987 = vpack.c.b16 %v835, %v831
        %v988 = vpack.c.b16 %v836, %v832
        %v989 = vpack.c.b16 %v837, %v833
        %v990 = vpack.c.b16 %v838, %v834
        %v991 = vpack.c.b16 %v843, %v839
        %v992 = vpack.c.b16 %v844, %v840
        %v993 = vpack.c.b16 %v845, %v841
        %v994 = vpack.c.b16 %v846, %v842
        %v995 = vpack.c.b16 %v851, %v847
        %v996 = vpack.c.b16 %v852, %v848
        %v997 = vpack.c.b16 %v853, %v849
        %v998 = vpack.c.b16 %v854, %v850
        %v999 = vpack.c.b16 %v859, %v855
        %v1000 = vpack.c.b16 %v860, %v856
        %v1001 = vpack.c.b16 %v861, %v857
        %v1002 = vpack.c.b16 %v862, %v858
        %v1003 = vpack.c.b16 %v867, %v863
        %v1004 = vpack.c.b16 %v868, %v864
        %v1005 = vpack.c.b16 %v869, %v865
        %v1006 = vpack.c.b16 %v870, %v866
        %v1007 = vpack.c.b16 %v875, %v871
        %v1008 = vpack.c.b16 %v876, %v872
        %v1009 = vpack.c.b16 %v877, %v873
        %v1010 = vpack.c.b16 %v878, %v874
        %v1011 = vpack.c.b16 %v883, %v879
        %v1012 = vpack.c.b16 %v884, %v880
        %v1013 = vpack.c.b16 %v885, %v881
        %v1014 = vpack.c.b16 %v886, %v882
        %v1015 = vpack.c.b16 %v891, %v887
        %v1016 = vpack.c.b16 %v892, %v888
        %v1017 = vpack.c.b16 %v893, %v889
        %v1018 = vpack.c.b16 %v894, %v890
        %v1019 = vpack.c.b16 %v899, %v895
        %v1020 = vpack.c.b16 %v900, %v896
        %v1021 = vpack.c.b16 %v901, %v897
        %v1022 = vpack.c.b16 %v902, %v898
        %v1023 = vpack.c.b16 %v907, %v903
        %v1024 = vpack.c.b16 %v908, %v904
        %v1025 = vpack.c.b16 %v909, %v905
        %v1026 = vpack.c.b16 %v910, %v906
        %v1027 = vpack.c.b16 %v915, %v911
        %v1028 = vpack.c.b16 %v916, %v912
        %v1029 = vpack.c.b16 %v917, %v913
        %v1030 = vpack.c.b16 %v918, %v914
        %v1031 = vpack.c.b16 %v923, %v919
        %v1032 = vpack.c.b16 %v924, %v920
        %v1033 = vpack.c.b16 %v925, %v921
        %v1034 = vpack.c.b16 %v926, %v922
        %v1035 = vpack.c.b16 %v931, %v927
        %v1036 = vpack.c.b16 %v932, %v928
        %v1037 = vpack.c.b16 %v933, %v929
        %v1038 = vpack.c.b16 %v934, %v930
        %v1039 = vpack.c.b16 %v939, %v935
        %v1040 = vpack.c.b16 %v940, %v936
        %v1041 = vpack.c.b16 %v941, %v937
        %v1042 = vpack.c.b16 %v942, %v938
        %v1043 = vpack.c.b16 %v947, %v943
        %v1044 = vpack.c.b16 %v948, %v944
        %v1045 = vpack.c.b16 %v949, %v945
        %v1046 = vpack.c.b16 %v950, %v946
        %v1047 = vpack.c.b16 %v955, %v951
        %v1048 = vpack.c.b16 %v956, %v952
        %v1049 = vpack.c.b16 %v957, %v953
        %v1050 = vpack.c.b16 %v958, %v954
        %v1051 = vpack.c.b16 %v963, %v959
        %v1052 = vpack.c.b16 %v964, %v960
        %v1053 = vpack.c.b16 %v965, %v961
        %v1054 = vpack.c.b16 %v966, %v962
        %v1055 = vpack.c.b16 %v971, %v967
        %v1056 = vpack.c.b16 %v972, %v968
        %v1057 = vpack.c.b16 %v973, %v969
        %v1058 = vpack.c.b16 %v974, %v970
        %v1059 = vpack.c.b16 %v979, %v975
        %v1060 = vpack.c.b16 %v980, %v976
        %v1061 = vpack.c.b16 %v981, %v977
        %v1062 = vpack.c.b16 %v982, %v978
        %vm1143 = vcmask 523264
        %v1145 = vsel %vm1143, %v640, 0
        %1147 = vmatprep.subr.bf16.mxu0 %v984
        %1148 = vmatpush1.bf16.msra.mxu0 %v983
        %1149 = vmatprep.subr.bf16.mxu0 %v988
        %1150 = vmatpush1.bf16.msra.mxu0 %v987
        %1151 = vmatprep.subr.bf16.mxu0 %v992
        %1152 = vmatpush1.bf16.msra.mxu0 %v991
        %1153 = vmatprep.subr.bf16.mxu0 %v996
        %1154 = vmatpush1.bf16.msra.mxu0 %v995
        %1155 = vmatprep.subr.bf16.mxu0 %v1000
        %1156 = vmatpush1.bf16.msra.mxu0 %v999
        %1157 = vmatprep.subr.bf16.mxu0 %v1004
        %1158 = vmatpush1.bf16.msra.mxu0 %v1003
        %1159 = vmatprep.subr.bf16.mxu0 %v1008
        %1160 = vmatpush1.bf16.msra.mxu0 %v1007
        %1161 = vmatprep.subr.bf16.mxu0 %v1012
        %1162 = vmatpush1.bf16.msra.mxu0 %v1011
        %1163 = vmatprep.subr.bf16.mxu0 %v1016
        %1164 = vmatpush1.bf16.msra.mxu0 %v1015
        %1165 = vmatprep.subr.bf16.mxu0 %v1020
        %1166 = vmatpush1.bf16.msra.mxu0 %v1019
        %1167 = vmatprep.subr.bf16.mxu0 %v1024
        %1168 = vmatpush1.bf16.msra.mxu0 %v1023
        %1169 = vmatprep.subr.bf16.mxu0 %v1028
        %1170 = vmatpush1.bf16.msra.mxu0 %v1027
        %1171 = vmatprep.subr.bf16.mxu0 %v1032
        %1172 = vmatpush1.bf16.msra.mxu0 %v1031
        %1173 = vmatprep.subr.bf16.mxu0 %v1036
        %1174 = vmatpush1.bf16.msra.mxu0 %v1035
        %1175 = vmatprep.subr.bf16.mxu0 %v1040
        %1176 = vmatpush1.bf16.msra.mxu0 %v1039
        %1177 = vmatprep.subr.bf16.mxu0 %v1044
        %1178 = vmatpush1.bf16.msra.mxu0 %v1043
        %1179 = vmatprep.mubr.bf16.mxu0 %v639
        %1180 = vmatmul.mubr.bf16.gmra.mrb[0].mxu0 %v638
        %v1181 = vpop.f32.mrb[0].mxu0
        %v1182 = vadd.f32 %v726, %v1181
        %v1183 = vpop.f32.mrb[0].mxu0
        %v1184 = vadd.f32 %v730, %v1183
        %v1185 = vpop.f32.mrb[0].mxu0
        %v1186 = vpop.f32.mrb[0].mxu0
        %1187 = vdwg.mxu0
        %1188 = vmatprep.subr.bf16.mxu0 %v1048
        %1189 = vmatpush1.bf16.msra.mxu0 %v1047
        %1190 = vmatprep.subr.bf16.mxu0 %v1052
        %1191 = vmatpush1.bf16.msra.mxu0 %v1051
        %1192 = vmatprep.subr.bf16.mxu0 %v1056
        %1193 = vmatpush1.bf16.msra.mxu0 %v1055
        %1194 = vmatprep.subr.bf16.mxu0 %v1060
        %1195 = vmatpush1.bf16.msra.mxu0 %v1059
        %1196 = vmatprep.subr.bf16.mxu0 0
        %1197 = vmatpush1.bf16.msra.mxu0 0
        %1198 = vmatprep.subr.bf16.mxu0 0
        %1199 = vmatpush1.bf16.msra.mxu0 0
        %1200 = vmatprep.subr.bf16.mxu0 0
        %1201 = vmatpush1.bf16.msra.mxu0 0
        %1202 = vmatprep.subr.bf16.mxu0 0
        %1203 = vmatpush1.bf16.msra.mxu0 0
        %1204 = vmatprep.subr.bf16.mxu0 0
        %1205 = vmatpush1.bf16.msra.mxu0 0
        %1206 = vmatprep.subr.bf16.mxu0 0
        %1207 = vmatpush1.bf16.msra.mxu0 0
        %1208 = vmatprep.subr.bf16.mxu0 0
        %1209 = vmatpush1.bf16.msra.mxu0 0
        %1210 = vmatprep.subr.bf16.mxu0 0
        %1211 = vmatpush1.bf16.msra.mxu0 0
        %1212 = vmatprep.subr.bf16.mxu0 0
        %1213 = vmatpush1.bf16.msra.mxu0 0
        %1214 = vmatprep.subr.bf16.mxu0 0
        %1215 = vmatpush1.bf16.msra.mxu0 0
        %1216 = vmatprep.subr.bf16.mxu0 0
        %1217 = vmatpush1.bf16.msra.mxu0 0
        %1218 = vmatprep.subr.bf16.mxu0 0
        %1219 = vmatpush1.bf16.msra.mxu0 0
        %1220 = vmatprep.mubr.bf16.mxu0 0
        %1221 = vmatmul.mubr.bf16.gmra.mrb[0].mxu0 %v1145
        %v1222 = vpop.f32.mrb[0].mxu0
        %v1223 = vadd.f32 %v1182, %v1222
        %v1224 = vpop.f32.mrb[0].mxu0
        %v1225 = vadd.f32 %v1184, %v1224
        %v1226 = vpop.f32.mrb[0].mxu0
        %v1227 = vpop.f32.mrb[0].mxu0
        %1228 = vdwg.mxu0
        %1229 = vmatprep.subr.bf16.mxu0 %v986
        %1230 = vmatpush1.bf16.msra.mxu0 %v985
        %1231 = vmatprep.subr.bf16.mxu0 %v990
        %1232 = vmatpush1.bf16.msra.mxu0 %v989
        %1233 = vmatprep.subr.bf16.mxu0 %v994
        %1234 = vmatpush1.bf16.msra.mxu0 %v993
        %1235 = vmatprep.subr.bf16.mxu0 %v998
        %1236 = vmatpush1.bf16.msra.mxu0 %v997
        %1237 = vmatprep.subr.bf16.mxu0 %v1002
        %1238 = vmatpush1.bf16.msra.mxu0 %v1001
        %1239 = vmatprep.subr.bf16.mxu0 %v1006
        %1240 = vmatpush1.bf16.msra.mxu0 %v1005
        %1241 = vmatprep.subr.bf16.mxu0 %v1010
        %1242 = vmatpush1.bf16.msra.mxu0 %v1009
        %1243 = vmatprep.subr.bf16.mxu0 %v1014
        %1244 = vmatpush1.bf16.msra.mxu0 %v1013
        %1245 = vmatprep.subr.bf16.mxu0 %v1018
        %1246 = vmatpush1.bf16.msra.mxu0 %v1017
        %1247 = vmatprep.subr.bf16.mxu0 %v1022
        %1248 = vmatpush1.bf16.msra.mxu0 %v1021
        %1249 = vmatprep.subr.bf16.mxu0 %v1026
        %1250 = vmatpush1.bf16.msra.mxu0 %v1025
        %1251 = vmatprep.subr.bf16.mxu0 %v1030
        %1252 = vmatpush1.bf16.msra.mxu0 %v1029
        %1253 = vmatprep.subr.bf16.mxu0 %v1034
        %1254 = vmatpush1.bf16.msra.mxu0 %v1033
        %1255 = vmatprep.subr.bf16.mxu0 %v1038
        %1256 = vmatpush1.bf16.msra.mxu0 %v1037
        %1257 = vmatprep.subr.bf16.mxu0 %v1042
        %1258 = vmatpush1.bf16.msra.mxu0 %v1041
        %1259 = vmatprep.subr.bf16.mxu0 %v1046
        %1260 = vmatpush1.bf16.msra.mxu0 %v1045
        %1261 = vmatprep.mubr.bf16.mxu0 %v639
        %1262 = vmatmul.mubr.bf16.gmra.mrb[0].mxu0 %v638
        %v1263 = vpop.f32.mrb[0].mxu0
        %v1264 = vadd.f32 %v734, %v1263
        %v1265 = vpop.f32.mrb[0].mxu0
        %v1266 = vadd.f32 %v738, %v1265
        %v1267 = vpop.f32.mrb[0].mxu0
        %v1268 = vpop.f32.mrb[0].mxu0
        %1269 = vdwg.mxu0
        %1270 = vmatprep.subr.bf16.mxu0 %v1050
        %1271 = vmatpush1.bf16.msra.mxu0 %v1049
        %1272 = vmatprep.subr.bf16.mxu0 %v1054
        %1273 = vmatpush1.bf16.msra.mxu0 %v1053
        %1274 = vmatprep.subr.bf16.mxu0 %v1058
        %1275 = vmatpush1.bf16.msra.mxu0 %v1057
        %1276 = vmatprep.subr.bf16.mxu0 %v1062
        %1277 = vmatpush1.bf16.msra.mxu0 %v1061
        %1278 = vmatprep.subr.bf16.mxu0 0
        %1279 = vmatpush1.bf16.msra.mxu0 0
        %1280 = vmatprep.subr.bf16.mxu0 0
        %1281 = vmatpush1.bf16.msra.mxu0 0
        %1282 = vmatprep.subr.bf16.mxu0 0
        %1283 = vmatpush1.bf16.msra.mxu0 0
        %1284 = vmatprep.subr.bf16.mxu0 0
        %1285 = vmatpush1.bf16.msra.mxu0 0
        %1286 = vmatprep.subr.bf16.mxu0 0
        %1287 = vmatpush1.bf16.msra.mxu0 0
        %1288 = vmatprep.subr.bf16.mxu0 0
        %1289 = vmatpush1.bf16.msra.mxu0 0
        %1290 = vmatprep.subr.bf16.mxu0 0
        %1291 = vmatpush1.bf16.msra.mxu0 0
        %1292 = vmatprep.subr.bf16.mxu0 0
        %1293 = vmatpush1.bf16.msra.mxu0 0
        %1294 = vmatprep.subr.bf16.mxu0 0
        %1295 = vmatpush1.bf16.msra.mxu0 0
        %1296 = vmatprep.subr.bf16.mxu0 0
        %1297 = vmatpush1.bf16.msra.mxu0 0
        %1298 = vmatprep.subr.bf16.mxu0 0
        %1299 = vmatpush1.bf16.msra.mxu0 0
        %1300 = vmatprep.subr.bf16.mxu0 0
        %1301 = vmatpush1.bf16.msra.mxu0 0
        %1302 = vmatprep.mubr.bf16.mxu0 0
        %1303 = vmatmul.mubr.bf16.gmra.mrb[0].mxu0 %v1145
        %v1304 = vpop.f32.mrb[0].mxu0
        %v1305 = vadd.f32 %v1264, %v1304
        %v1306 = vpop.f32.mrb[0].mxu0
        %v1307 = vadd.f32 %v1266, %v1306
        %v1308 = vpop.f32.mrb[0].mxu0
        %v1309 = vpop.f32.mrb[0].mxu0
        %1310 = vdwg.mxu0
        %v1311 = vxor.u32 %v1223, 2147483648
        %v1312 = vmul.f32 %v1311, 1.442695
        %v1313 = vpow.pop %v1312
        %v1314 = vadd.f32 %v1313, 1.0
        %v1315 = vrcp.pop %v1314
        %v1316 = vmul.f32 1.0, %v1315
        %v1317 = vxor.u32 %v1225, 2147483648
        %v1318 = vmul.f32 %v1317, 1.442695
        %v1319 = vpow.pop %v1318
        %v1320 = vadd.f32 %v1319, 1.0
        %v1321 = vrcp.pop %v1320
        %v1322 = vmul.f32 1.0, %v1321
        %v1323 = vmul.f32 %v1316, %v1307
        %v1324 = vadd.f32 %v1305, %v1323
        %v1325 = vtanh.pop %v1324
        %v1326 = vsub.f32 1.0, %v1322
        %v1327 = vmul.f32 %v1326, %v1325
        %v1328 = vmul.f32 %v1322, %v346
        %v1329 = vadd.f32 %v1327, %v1328
        %1330 = vst [vmem:[#allocation2] sm:$0xf] %v1329
        %1331 = vst [vmem:[#allocation10] sm:$0xf] %v1329
        %v1332 = vpack.c.bf16 %v1329, %v1329
        %v1333 = vld [vmem:[%s6] sm:$0xf]
        %v1334 = vld [vmem:[%s6 + $0x4] sm:$0xf]
        %v1335 = vld [vmem:[%s6 + $0x8] sm:$0xf]
        %v1336 = vld [vmem:[%s6 + $0xc] sm:$0xf]
        %v1337 = vld [vmem:[%s6 + $0x10] sm:$0xf]
        %v1338 = vld [vmem:[%s6 + $0x14] sm:$0xf]
        %v1339 = vld [vmem:[%s6 + $0x18] sm:$0xf]
        %v1340 = vld [vmem:[%s6 + $0x1c] sm:$0xf]
        %v1341 = vld [vmem:[%s6 + $0x20] sm:$0xf]
        %v1342 = vld [vmem:[%s6 + $0x24] sm:$0xf]
        %v1343 = vld [vmem:[%s6 + $0x28] sm:$0xf]
        %v1344 = vld [vmem:[%s6 + $0x2c] sm:$0xf]
        %v1345 = vld [vmem:[%s6 + $0x30] sm:$0xf]
        %v1346 = vld [vmem:[%s6 + $0x34] sm:$0xf]
        %v1347 = vld [vmem:[%s6 + $0x38] sm:$0xf]
        %v1348 = vld [vmem:[%s6 + $0x3c] sm:$0xf]
        %v1349 = vld [vmem:[%s7] sm:$0x1]
        %v1351 = vlaneseq
        %v1352 = vshrl.u32 %v1351, 7
        %v1353 = vsub.s32 0, %v1352
        %v1354 = vrot.slane %v1349, %v1353
        %v1372 = vunpack.c.l.b16 %v1333
        %v1373 = vunpack.c.l.b16 %v1334
        %v1374 = vunpack.c.l.b16 %v1335
        %v1375 = vunpack.c.l.b16 %v1336
        %v1376 = vunpack.c.l.b16 %v1337
        %v1377 = vunpack.c.l.b16 %v1338
        %v1378 = vunpack.c.l.b16 %v1339
        %v1379 = vunpack.c.l.b16 %v1340
        %v1380 = vunpack.c.l.b16 %v1341
        %v1381 = vunpack.c.l.b16 %v1342
        %v1382 = vunpack.c.l.b16 %v1343
        %v1383 = vunpack.c.l.b16 %v1344
        %v1384 = vunpack.c.l.b16 %v1345
        %v1385 = vunpack.c.l.b16 %v1346
        %v1386 = vunpack.c.l.b16 %v1347
        %v1387 = vunpack.c.l.b16 %v1348
        %v1388 = vpack.c.b16 %v1373, %v1372
        %v1389 = vpack.c.b16 %v1375, %v1374
        %v1390 = vpack.c.b16 %v1377, %v1376
        %v1391 = vpack.c.b16 %v1379, %v1378
        %v1392 = vpack.c.b16 %v1381, %v1380
        %v1393 = vpack.c.b16 %v1383, %v1382
        %v1394 = vpack.c.b16 %v1385, %v1384
        %v1395 = vpack.c.b16 %v1387, %v1386
        %1404 = vmatprep.subr.bf16.mxu0 0
        %1405 = vmatpush1.bf16.msra.mxu0 %v1388
        %1406 = vmatprep.subr.bf16.mxu0 0
        %1407 = vmatpush1.bf16.msra.mxu0 %v1389
        %1408 = vmatprep.subr.bf16.mxu0 0
        %1409 = vmatpush1.bf16.msra.mxu0 %v1390
        %1410 = vmatprep.subr.bf16.mxu0 0
        %1411 = vmatpush1.bf16.msra.mxu0 %v1391
        %1412 = vmatprep.subr.bf16.mxu0 0
        %1413 = vmatpush1.bf16.msra.mxu0 %v1392
        %1414 = vmatprep.subr.bf16.mxu0 0
        %1415 = vmatpush1.bf16.msra.mxu0 %v1393
        %1416 = vmatprep.subr.bf16.mxu0 0
        %1417 = vmatpush1.bf16.msra.mxu0 %v1394
        %1418 = vmatprep.subr.bf16.mxu0 0
        %1419 = vmatpush1.bf16.msra.mxu0 %v1395
        %1420 = vmatprep.subr.bf16.mxu0 0
        %1421 = vmatpush1.bf16.msra.mxu0 0
        %1422 = vmatprep.subr.bf16.mxu0 0
        %1423 = vmatpush1.bf16.msra.mxu0 0
        %1424 = vmatprep.subr.bf16.mxu0 0
        %1425 = vmatpush1.bf16.msra.mxu0 0
        %1426 = vmatprep.subr.bf16.mxu0 0
        %1427 = vmatpush1.bf16.msra.mxu0 0
        %1428 = vmatprep.subr.bf16.mxu0 0
        %1429 = vmatpush1.bf16.msra.mxu0 0
        %1430 = vmatprep.subr.bf16.mxu0 0
        %1431 = vmatpush1.bf16.msra.mxu0 0
        %1432 = vmatprep.subr.bf16.mxu0 0
        %1433 = vmatpush1.bf16.msra.mxu0 0
        %1434 = vmatprep.subr.bf16.mxu0 0
        %1435 = vmatpush1.bf16.msra.mxu0 0
        %1436 = vmatprep.mubr.bf16.mxu0 0
        %1437 = vmatmul.mubr.bf16.gmra.mrb[0].mxu0 %v1332
        %v1438 = vpop.f32.mrb[0].mxu0
        %v1439 = vadd.f32 %v1354, %v1438
        %v1440 = vpop.f32.mrb[0].mxu0
        %v1441 = vpop.f32.mrb[0].mxu0
        %v1442 = vpop.f32.mrb[0].mxu0
        %1443 = vdwg.mxu0
        %vm1444 = vcmask 1043456
        %v1445 = vsel %vm1444, %v1439, -inf
        %1446 = vmax.xlane.f32.xlu0 %v1445
        %v1447 = vpop.xlane.xlu0 %1446
        %v1448 = vsub.f32 %v1439, %v1447
        %v1449 = vmul.f32 %v1448, 1.442695
        %v1450 = vpow.pop %v1449
        %v1451 = vsel %vm1444, %v1450, 0.0
        %1452 = vadd.xlane.f32.xlu0 %v1451
        %v1453 = vpop.xlane.xlu0 %1452
        %v1454 = vlog2.pop %v1453
        %v1455 = vmul.f32 %v1454, 0.6931472
        %v1456 = vsub.f32 %v1448, %v1455
        %1457 = vst [vmem:[%s329] sm:$0xf] %v1456
        %s1458 = sand.u32 %s33, 1
        %s1459 = scalar_lea.sflag [#allocation8], %s1458
        %s1460 = sand.u32 %s188, 1
        %s1461 = smul.addr %s1460, 4
        %s1462 = scalar_lea.vmem [#allocation9], %s1461
        %s1463 = sand.u32 %s33, 1
        %s1464 = scalar_lea.sflag [#allocation8], %s1463
        %s1465 = sand.u32 %s235, 1
        %s1466 = smul.addr %s1465, 4
        %s1467 = scalar_lea.vmem [#allocation12], %s1466
        // Predicated region
        $region57: #{tpu_custom_call.1} parent=47 // pred_check
          %p1468 = pneg %p198
        $region58: #{tpu_custom_call.1} parent=47 // pred_check_branch
          %1470 = sbr.rel (%p1468) target = $region60
        $region59: #{tpu_custom_call.1} parent=47 // pred_region
          %s1472 = ssub.s32 64, 64
          %1473 = vsyncadd %s1459, %s1472
          %s1474 = smul.addr %s33, 64
          %s1475 = scalar_lea.hbm %s8, %s1474
          %s1477 = sshll.u32 %s1462, 4
          %s1478 = int_to_ptr.vmem [resolvable:$true] %s1477
          %1480 = dma.vmem_to_hbm [thread:$0]  %s1478, 64, %s1475, %s1459
        $region60: #{tpu_custom_call.1} parent=47 // pred_fallthru
          _
        // Predicated region
        $region61: #{tpu_custom_call.1} parent=47 // pred_check
          %p1481 = pneg %p219
        $region62: #{tpu_custom_call.1} parent=47 // pred_check_branch
          %1483 = sbr.rel (%p1481) target = $region64
        $region63: #{tpu_custom_call.1} parent=47 // pred_region
          %s1485 = ssub.s32 64, 64
          %1486 = vsyncadd [#allocation11], %s1485
          %s1488 = sshll.u32 [#allocation10], 4
          %s1489 = int_to_ptr.vmem [resolvable:$true] %s1488
          %1491 = dma.vmem_to_hbm [thread:$0]  %s1489, 64, %s9, [#allocation11]
        $region64: #{tpu_custom_call.1} parent=47 // pred_fallthru
          _
        // Predicated region
        $region65: #{tpu_custom_call.1} parent=47 // pred_check
          %p1492 = pneg %p245
        $region66: #{tpu_custom_call.1} parent=47 // pred_check_branch
          %1494 = sbr.rel (%p1492) target = $region68
        $region67: #{tpu_custom_call.1} parent=47 // pred_region
          %s1496 = ssub.s32 64, 64
          %1497 = vsyncadd %s1464, %s1496
          %s1498 = smul.addr %s33, 64
          %s1499 = scalar_lea.hbm %s10, %s1498
          %s1501 = sshll.u32 %s1467, 4
          %s1502 = int_to_ptr.vmem [resolvable:$true] %s1501
          %1504 = dma.vmem_to_hbm [thread:$0]  %s1502, 64, %s1499, %s1464
        $region68: #{tpu_custom_call.1} parent=47 // pred_fallthru
          _
        // Predicated region
        $region69: #{tpu_custom_call.1} parent=47 // pred_check
          %p1505 = pneg %p219
        $region70: #{tpu_custom_call.1} parent=47 // pred_check_branch
          %1507 = sbr.rel (%p1505) target = $region72
        $region71: #{tpu_custom_call.1} parent=47 // pred_region
          %1508 = dma.done [#allocation11], 64
        $region72: #{tpu_custom_call.1} parent=47 // pred_fallthru
          _
      $region48: #{tpu_custom_call.1} parent=5 // pred_fallthru
        _
      %p1509 = scmp.le.s32.totalorder 2, %s28
      // Predicated region
      $region73: #{tpu_custom_call.1} parent=5 // pred_check
        %p1510 = pneg %p1509
      $region74: #{tpu_custom_call.1} parent=5 // pred_check_branch
        %1512 = sbr.rel (%p1510) target = $region76
      $region75: #{tpu_custom_call.1} parent=5 // pred_region
        %s1513 = ssub.s32 %s28, 2
        // Predicated region
        $region77: #{tpu_custom_call.1} parent=75 // pred_check
          %p1514 = pneg %p204
        $region78: #{tpu_custom_call.1} parent=75 // pred_check_branch
          %1516 = sbr.rel (%p1514) target = $region80
        $region79: #{tpu_custom_call.1} parent=75 // pred_region
          %s1517 = sand.u32 %s34, 1
          %s1518 = scalar_lea.sflag [#allocation8], %s1517
          %s1519 = sand.u32 %s189, 1
          %s1520 = smul.addr %s1519, 4
          %s1521 = scalar_lea.vmem [#allocation9], %s1520
          %1522 = dma.done %s1518, 64
        $region80: #{tpu_custom_call.1} parent=75 // pred_fallthru
          _
        // Predicated region
        $region81: #{tpu_custom_call.1} parent=75 // pred_check
          %p1523 = pneg %p251
        $region82: #{tpu_custom_call.1} parent=75 // pred_check_branch
          %1525 = sbr.rel (%p1523) target = $region84
        $region83: #{tpu_custom_call.1} parent=75 // pred_region
          %s1526 = sand.u32 %s34, 1
          %s1527 = scalar_lea.sflag [#allocation8], %s1526
          %s1528 = sand.u32 %s236, 1
          %s1529 = smul.addr %s1528, 4
          %s1530 = scalar_lea.vmem [#allocation12], %s1529
          %1531 = dma.done %s1527, 64
        $region84: #{tpu_custom_call.1} parent=75 // pred_fallthru
          _
      $region76: #{tpu_custom_call.1} parent=5 // pred_fallthru
        _
    $region6: #{tpu_custom_call.1} parent=1 // loop_footer
      %s32 = sadd.s32 1, %s28
    $region7: #{tpu_custom_call.1} parent=1 // loop_footer_branch
      %27 = sbr.rel target = $region3
    $region8: #{tpu_custom_call.1} parent=1 // loop_exit
      _
    %1532 = vsyncpa [#allocation7], 1
    %s1533 = scalar_lea.sflag [#allocation7], 1
    %1534 = vsyncpa %s1533, 1
    %1535 = vsyncpa [#allocation8], 1
    %s1536 = scalar_lea.sflag [#allocation8], 1
    %1537 = vsyncpa %s1536, 1
    %1538 = vsyncpa [#allocation11], 1

</llo_original>
